<compile_context>
chip_gen: v7x
topology: tpu7x:2x2x1
jax: 0.10.0
libtpu: 0.0.40
codegen_flags: <defaults>
</compile_context>

<pallas_src>
import functools

import jax
import jax.numpy as jnp
from jax import lax
from jax.experimental import pallas as pl
from jax.experimental.pallas import tpu as pltpu

F32 = jnp.float32
BF16 = jnp.bfloat16
I32 = jnp.int32


# ----------------------------------------------------------------------------- kernel helpers

def _dot(a_bf16, b_bf16):
    # MXU matmul on already-bf16 operands, f32 accumulation.
    return jnp.dot(a_bf16, b_bf16, preferred_element_type=F32)


# ----------------------------------------------------------------------------- kernel

def _gnn_layer_kernel(eps_ref,                       # SMEM (L,) f32
                      h0_ref,                        # (1, N, D)    f32
                      eemb_ref,                      # (1, 1, E, D) f32  (this layer's edge emb)
                      src_ref,                       # (1, E, 1)    i32
                      dst_ref,                       # (1, 1, E)    i32
                      bcol_ref,                      # (1, N, 1)    i32
                      brow_ref,                      # (1, 1, N)    i32
                      invc_ref,                      # (1, G, 1)    f32
                      w1_ref, b1_ref,                # (1, D, 2D) bf16 / (1, 1, 2D) f32
                      w2_ref, b2_ref,                # (1, 2D, D) bf16 / (1, 1, D)  f32
                      vw1_ref, vb1_ref,              # (1, D, 2D) bf16 / (1, 1, 2D) f32 (zero-padded at last layer)
                      vw2_ref, vb2_ref,              # (1, 2D, D) bf16 / (1, 1, D)  f32
                      pw_ref, pb_ref,                # (D, Cp) bf16 / (1, Cp) f32
                      out_ref,                       # (1, G, Cp) f32
                      h_sc, vn_sc,                   # VMEM scratch (N, D) f32 / (G, D) f32
                      *, num_layer, num_nodes, num_edges, num_graphs):
    layer = pl.program_id(1)
    last = num_layer - 1

    @pl.when(layer == 0)
    def _init():
        h_sc[...] = h0_ref[0]                        # node_encoder output for this mini-batch
        vn_sc[...] = jnp.zeros_like(vn_sc)           # virtual node embedding init = 0

    # One-hot selectors built in-register from index vectors (nothing O(E*N) lives in HBM/VMEM).
    src_oh = (src_ref[0] ==
              lax.broadcasted_iota(I32, (num_edges, num_nodes), 1)).astype(BF16)    # (E, N)
    dst_ohT = (dst_ref[0] ==
               lax.broadcasted_iota(I32, (num_nodes, num_edges), 0)).astype(BF16)   # (N, E)
    b_oh = (bcol_ref[0] ==
            lax.broadcasted_iota(I32, (num_nodes, num_graphs), 1)).astype(BF16)     # (N, G)
    b_ohT = (brow_ref[0] ==
             lax.broadcasted_iota(I32, (num_graphs, num_nodes), 0)).astype(BF16)    # (G, N)

    h = h_sc[...]                                    # (N, D) f32
    vn = vn_sc[...]                                  # (G, D) f32

    # h_list[layer] = h + vn[batch]
    h_in = h + _dot(b_oh, vn.astype(BF16))           # (N, D) f32
    h_in_bf = h_in.astype(BF16)                      # cast once, reused by two matmuls

    # GINConv (edge encoder precomputed outside the kernel):
    #   msg = relu(x[src] + edge_emb); agg = (1+eps)*x + scatter_add(msg, dst)
    eps = eps_ref[layer]
    xj = _dot(src_oh, h_in_bf)                                            # (E, D) gather
    msg = jnp.maximum(xj + eemb_ref[0, 0], 0.0)                           # (E, D)
    agg = (1.0 + eps) * h_in + _dot(dst_ohT, msg.astype(BF16))            # (N, D)

    # GIN MLP (BatchNorms folded into the linears; eval mode so dropout = identity).
    z = jnp.maximum(_dot(agg.astype(BF16), w1_ref[0]) + b1_ref[0], 0.0)   # (N, 2D)
    h_new = _dot(z.astype(BF16), w2_ref[0]) + b2_ref[0]                   # (N, D)

    @pl.when(layer != last)
    def _not_last():
        # trailing ReLU on all but the last layer
        h_sc[...] = jnp.maximum(h_new, 0.0)
        # virtual-node update from h_list[layer] (= h_in): add-pool + 2-layer MLP (BN folded)
        pooled = _dot(b_ohT, h_in_bf)                                     # (G, D)
        vn_tmp = pooled + vn
        zv = jnp.maximum(_dot(vn_tmp.astype(BF16), vw1_ref[0]) + vb1_ref[0], 0.0)
        vn_sc[...] = jnp.maximum(_dot(zv.astype(BF16), vw2_ref[0]) + vb2_ref[0], 0.0)

    @pl.when(layer == last)
    def _finalize():
        # JK='last' -> h_new; global_mean_pool (exact 0/1 add-pool * f32 reciprocal counts)
        g = _dot(b_ohT, h_new.astype(BF16)) * invc_ref[0]                 # (G, D)
        out_ref[0] = _dot(g.astype(BF16), pw_ref[...]) + pb_ref[...]      # (G, Cp)


# ----------------------------------------------------------------------------- wrapper

def gnn_forward_pallas(args, *, num_layer, num_nodes, num_edges, num_graphs,
                       emb_dim, num_class_padded, num_batches):
    N, E, G, D, Cp = num_nodes, num_edges, num_graphs, emb_dim, num_class_padded
    D2, B, L = 2 * emb_dim, num_batches, num_layer

    kern = functools.partial(_gnn_layer_kernel, num_layer=L, num_nodes=N,
                             num_edges=E, num_graphs=G)

    per_batch = lambda b, l: (b, 0, 0)
    per_layer = lambda b, l: (l, 0, 0)

    in_specs = [
        pl.BlockSpec(memory_space=pltpu.MemorySpace.SMEM),            # eps (L,)
        pl.BlockSpec((1, N, D), per_batch),                           # h0
        pl.BlockSpec((1, 1, E, D), lambda b, l: (b, l, 0, 0)),        # eemb (per batch, per layer)
        pl.BlockSpec((1, E, 1), per_batch),                           # src indices
        pl.BlockSpec((1, 1, E), per_batch),                           # dst indices
        pl.BlockSpec((1, N, 1), per_batch),                           # batch (column layout)
        pl.BlockSpec((1, 1, N), per_batch),                           # batch (row layout)
        pl.BlockSpec((1, G, 1), per_batch),                           # 1 / graph node counts (f32)
        pl.BlockSpec((1, D, D2), per_layer),                          # w1
        pl.BlockSpec((1, 1, D2), per_layer),                          # b1
        pl.BlockSpec((1, D2, D), per_layer),                          # w2
        pl.BlockSpec((1, 1, D), per_layer),                           # b2
        pl.BlockSpec((1, D, D2), per_layer),                          # vw1
        pl.BlockSpec((1, 1, D2), per_layer),                          # vb1
        pl.BlockSpec((1, D2, D), per_layer),                          # vw2
        pl.BlockSpec((1, 1, D), per_layer),                           # vb2
        pl.BlockSpec((D, Cp), lambda b, l: (0, 0)),                   # pred_w (padded to 128 lanes)
        pl.BlockSpec((1, Cp), lambda b, l: (0, 0)),                   # pred_b
    ]
    out_spec = pl.BlockSpec((1, G, Cp), per_batch)

    flops = B * L * (4 * E * N * D + 8 * N * D * D + 4 * N * G * D + 8 * G * D * D) \
        + B * 2 * G * D * Cp
    bytes_accessed = sum(int(a.size) * a.dtype.itemsize for a in args) + B * G * Cp * 4

    grid_spec = pltpu.PrefetchScalarGridSpec(
        num_scalar_prefetch=0,
        grid=(B, L),
        in_specs=in_specs,
        out_specs=out_spec,
        scratch_shapes=[pltpu.VMEM((N, D), F32),      # h carried across the layer axis
                        pltpu.VMEM((G, D), F32)],     # virtual-node embedding
    )
    return pl.pallas_call(
        kern,
        out_shape=jax.ShapeDtypeStruct((B, G, Cp), F32),
        grid_spec=grid_spec,
        compiler_params=pltpu.CompilerParams(
            dimension_semantics=("parallel", "arbitrary"),   # mini-batch axis -> v7x megacore
            vmem_limit_bytes=32 * 1024 * 1024),
        cost_estimate=pl.CostEstimate(flops=flops, transcendentals=0,
                                      bytes_accessed=bytes_accessed),
    )(*args)


# ----------------------------------------------------------------------------- params

def _bn_fold(gamma, beta, mean, var, eps=1e-5):
    s = gamma / jnp.sqrt(var + eps)
    t = beta - mean * s
    return s, t


def init_params(key, num_layer, emb_dim, num_class, vocab=300, edge_feat=7):
    keys = iter(jax.random.split(key, 512))

    def lin(din, dout):
        w = jax.random.normal(next(keys), (din, dout), F32) / jnp.sqrt(din)
        b = 0.01 * jax.random.normal(next(keys), (dout,), F32)
        return w, b

    def bn(d):
        gamma = 1.0 + 0.1 * jax.random.normal(next(keys), (d,), F32)
        beta = 0.1 * jax.random.normal(next(keys), (d,), F32)
        mean = 0.1 * jax.random.normal(next(keys), (d,), F32)
        var = 0.5 + jax.random.uniform(next(keys), (d,), F32)
        return gamma, beta, mean, var

    p = {
        "node_table": 0.1 * jax.random.normal(next(keys), (vocab, emb_dim), F32),
        "layers": [],
        "vn_mlps": [],
    }
    for _ in range(num_layer):
        p["layers"].append({
            "edge_lin": lin(edge_feat, emb_dim),
            "eps": jnp.zeros((), F32),                 # GIN eps init = 0
            "mlp_lin1": lin(emb_dim, 2 * emb_dim),
            "mlp_bn1": bn(2 * emb_dim),
            "mlp_lin2": lin(2 * emb_dim, emb_dim),
            "layer_bn": bn(emb_dim),
        })
    for _ in range(num_layer - 1):
        p["vn_mlps"].append({
            "lin1": lin(emb_dim, 2 * emb_dim),
            "bn1": bn(2 * emb_dim),
            "lin2": lin(2 * emb_dim, emb_dim),
            "bn2": bn(emb_dim),
        })
    p["pred_lin"] = lin(emb_dim, num_class)
    return p


def prepare_args(params, x_idx, edge_attr, src, dst, batch, num_layer, num_graphs,
                 num_class_padded):
    """Fold BN into the linears, precompute per-layer edge embeddings, stack per-layer
    weights as (L, ...), build index vectors, cast MXU operands to bf16."""
    L, G = num_layer, num_graphs
    D = params["node_table"].shape[1]

    # node_encoder embedding lookup (glue gather, plain JAX)
    h0 = jnp.take(params["node_table"], x_idx, axis=0).astype(F32)              # (B, N, D)

    eps = jnp.stack([params["layers"][l]["eps"] for l in range(L)]).astype(F32)  # (L,)

    # edge encoder hoisted out of the kernel: eemb[b, l] = edge_attr[b] @ ew_l + eb_l
    ew = jnp.stack([params["layers"][l]["edge_lin"][0] for l in range(L)])       # (L, 7, D)
    eb = jnp.stack([params["layers"][l]["edge_lin"][1] for l in range(L)])       # (L, D)
    eemb = jnp.einsum("bef,lfd->bled", edge_attr.astype(BF16), ew.astype(BF16),
                      preferred_element_type=F32) + eb[None, :, None, :]         # (B, L, E, D)

    w1, b1, w2, b2 = [], [], [], []
    for l in range(L):
        lp = params["layers"][l]
        mw1, mb1 = lp["mlp_lin1"]
        s1, t1 = _bn_fold(*lp["mlp_bn1"])
        w1.append(mw1 * s1[None, :]); b1.append((mb1 * s1 + t1)[None, :])
        mw2, mb2 = lp["mlp_lin2"]
        s2, t2 = _bn_fold(*lp["layer_bn"])
        w2.append(mw2 * s2[None, :]); b2.append((mb2 * s2 + t2)[None, :])

    vw1, vb1, vw2, vb2 = [], [], [], []
    for l in range(L - 1):
        vp = params["vn_mlps"][l]
        aw, ab = vp["lin1"]
        s1, t1 = _bn_fold(*vp["bn1"])
        vw1.append(aw * s1[None, :]); vb1.append((ab * s1 + t1)[None, :])
        cw, cb = vp["lin2"]
        s2, t2 = _bn_fold(*vp["bn2"])
        vw2.append(cw * s2[None, :]); vb2.append((cb * s2 + t2)[None, :])
    # zero-pad virtual-node MLP stacks to L entries so the layer-grid BlockSpec index stays valid
    vw1.append(jnp.zeros((D, 2 * D), F32)); vb1.append(jnp.zeros((1, 2 * D), F32))
    vw2.append(jnp.zeros((2 * D, D), F32)); vb2.append(jnp.zeros((1, D), F32))

    pw, pb = params["pred_lin"]
    num_class = pw.shape[1]
    pw_pad = jnp.zeros((D, num_class_padded), F32).at[:, :num_class].set(pw)
    pb_pad = jnp.zeros((1, num_class_padded), F32).at[0, :num_class].set(pb)

    # sparse graph structure: small int32 index vectors (expanded to per-tile one-hots in-kernel)
    src_col = src.astype(I32)[:, :, None]           # (B, E, 1)
    dst_row = dst.astype(I32)[:, None, :]           # (B, 1, E)
    batch_col = batch.astype(I32)[:, :, None]       # (B, N, 1)
    batch_row = batch.astype(I32)[:, None, :]       # (B, 1, N)
    counts = jnp.sum(batch[:, :, None] == jnp.arange(G, dtype=I32)[None, None, :], axis=1)
    inv_counts = (1.0 / jnp.maximum(counts, 1).astype(F32))[:, :, None]          # (B, G, 1) f32

    return (
        eps,                                                 # SMEM scalars
        h0, eemb,
        src_col, dst_row, batch_col, batch_row, inv_counts,
        jnp.stack(w1).astype(BF16), jnp.stack(b1).astype(F32),
        jnp.stack(w2).astype(BF16), jnp.stack(b2).astype(F32),
        jnp.stack(vw1).astype(BF16), jnp.stack(vb1).astype(F32),
        jnp.stack(vw2).astype(BF16), jnp.stack(vb2).astype(F32),
        pw_pad.astype(BF16), pb_pad.astype(F32),
    )


# ----------------------------------------------------------------------------- references

def _mm(a, b):
    return jnp.matmul(a.astype(BF16), b.astype(BF16), preferred_element_type=F32)


def gnn_reference_bf16(eps, h0, eemb, src_col, dst_row, batch_col, batch_row, inv_counts,
                       w1, b1, w2, b2, vw1, vb1, vw2, vb2, pred_w, pred_b, *, num_layer):
    """Pure-JAX reference with identical bf16-operand / f32-accumulate numerics."""
    B, N, D = h0.shape
    G = inv_counts.shape[1]
    n_iota = jnp.arange(N, dtype=I32)
    g_iota = jnp.arange(G, dtype=I32)
    src_oh = (src_col == n_iota[None, None, :]).astype(BF16)     # (B, E, N)
    dst_ohT = (dst_row == n_iota[None, :, None]).astype(BF16)    # (B, N, E)
    b_oh = (batch_col == g_iota[None, None, :]).astype(BF16)     # (B, N, G)
    b_ohT = (batch_row == g_iota[None, :, None]).astype(BF16)    # (B, G, N)

    h = h0
    vn = jnp.zeros((B, G, D), F32)
    for l in range(num_layer):
        h_in = h + _mm(b_oh, vn)
        xj = _mm(src_oh, h_in)
        msg = jnp.maximum(xj + eemb[:, l], 0.0)
        agg = (1.0 + eps[l]) * h_in + _mm(dst_ohT, msg)
        z = jnp.maximum(_mm(agg, w1[l]) + b1[l], 0.0)
        h_new = _mm(z, w2[l]) + b2[l]
        if l != num_layer - 1:
            h_new = jnp.maximum(h_new, 0.0)
        if l < num_layer - 1:
            pooled = _mm(b_ohT, h_in)
            vn_tmp = pooled + vn
            zv = jnp.maximum(_mm(vn_tmp, vw1[l]) + vb1[l], 0.0)
            vn = jnp.maximum(_mm(zv, vw2[l]) + vb2[l], 0.0)
        h = h_new
    g = _mm(b_ohT, h) * inv_counts
    return _mm(g, pred_w) + pred_b


def gnn_reference_f32(params, x_idx, edge_attr, src, dst, batch, num_layer, num_graphs):
    """Full-precision reference of the original module math with real gather/scatter indexing."""
    B, N = x_idx.shape
    D = params["node_table"].shape[1]
    outs = []
    for bi in range(B):
        h = params["node_table"][x_idx[bi]]
        vn = jnp.zeros((num_graphs, D), F32)
        bvec = batch[bi]
        for l in range(num_layer):
            lp = params["layers"][l]
            h_in = h + vn[bvec]
            ew, ebias = lp["edge_lin"]
            eemb = edge_attr[bi] @ ew + ebias
            msg = jnp.maximum(h_in[src[bi]] + eemb, 0.0)
            agg = (1.0 + lp["eps"]) * h_in + jnp.zeros((N, D), F32).at[dst[bi]].add(msg)
            lw1, lb1 = lp["mlp_lin1"]; s1, t1 = _bn_fold(*lp["mlp_bn1"])
            z = jnp.maximum((agg @ lw1 + lb1) * s1 + t1, 0.0)
            lw2, lb2 = lp["mlp_lin2"]; s2, t2 = _bn_fold(*lp["layer_bn"])
            h_new = (z @ lw2 + lb2) * s2 + t2
            if l != num_layer - 1:
                h_new = jnp.maximum(h_new, 0.0)
            if l < num_layer - 1:
                vp = params["vn_mlps"][l]
                pooled = jnp.zeros((num_graphs, D), F32).at[bvec].add(h_in)
                vn_tmp = pooled + vn
                aw, ab = vp["lin1"]; vs1, vt1 = _bn_fold(*vp["bn1"])
                zv = jnp.maximum((vn_tmp @ aw + ab) * vs1 + vt1, 0.0)
                cw, cb = vp["lin2"]; vs2, vt2 = _bn_fold(*vp["bn2"])
                vn = jnp.maximum((zv @ cw + cb) * vs2 + vt2, 0.0)
            h = h_new
        counts = jnp.zeros((num_graphs,), F32).at[bvec].add(1.0)
        g = jnp.zeros((num_graphs, D), F32).at[bvec].add(h) / jnp.maximum(counts, 1.0)[:, None]
        pw, pb = params["pred_lin"]
        outs.append(g @ pw + pb)
    return jnp.stack(outs)


# ----------------------------------------------------------------------------- main

if __name__ == "__main__":
    NUM_LAYER = 3
    EMB_DIM = 128        # MXU lane-aligned (multiple of 128)
    NUM_CLASS = 4
    N_NODES = 16         # per mini-batch: 2 graphs x 8 nodes
    N_EDGES = 32
    N_GRAPHS = 2
    N_BATCHES = 2        # leading "parallel" grid axis (v7x megacore)
    EDGE_FEAT = 7
    C_PAD = 128          # lane-dense kernel output; sliced back to NUM_CLASS outside

    key = jax.random.PRNGKey(0)
    k_param, k_x, k_ea, k_s, k_d = jax.random.split(key, 5)

    params = init_params(k_param, NUM_LAYER, EMB_DIM, NUM_CLASS, edge_feat=EDGE_FEAT)

    # graph data (deterministic); edges stay within their graph (graph 0: nodes 0..7, graph 1: 8..15)
    x_idx = jax.random.randint(k_x, (N_BATCHES, N_NODES), 0, 300)
    edge_attr = jax.random.normal(k_ea, (N_BATCHES, N_EDGES, EDGE_FEAT), F32)
    half = N_EDGES // 2
    src = jnp.concatenate([
        jax.random.randint(k_s, (N_BATCHES, half), 0, 8),
        jax.random.randint(jax.random.fold_in(k_s, 1), (N_BATCHES, half), 8, 16),
    ], axis=1).astype(I32)
    dst = jnp.concatenate([
        jax.random.randint(k_d, (N_BATCHES, half), 0, 8),
        jax.random.randint(jax.random.fold_in(k_d, 1), (N_BATCHES, half), 8, 16),
    ], axis=1).astype(I32)
    batch = jnp.broadcast_to(
        jnp.concatenate([jnp.zeros(8, I32), jnp.ones(8, I32)]), (N_BATCHES, N_NODES))

    args = prepare_args(params, x_idx, edge_attr, src, dst, batch,
                        NUM_LAYER, N_GRAPHS, C_PAD)

    out_padded = gnn_forward_pallas(
        args, num_layer=NUM_LAYER, num_nodes=N_NODES, num_edges=N_EDGES,
        num_graphs=N_GRAPHS, emb_dim=EMB_DIM, num_class_padded=C_PAD,
        num_batches=N_BATCHES)
    out_padded = jax.block_until_ready(out_padded)
    out = out_padded[..., :NUM_CLASS]
    assert out.shape == (N_BATCHES, N_GRAPHS, NUM_CLASS)

    # tight check: pure-JAX reference with identical bf16/f32 numerics
    ref_bf16 = gnn_reference_bf16(*args, num_layer=NUM_LAYER)[..., :NUM_CLASS]
    assert jnp.allclose(out, ref_bf16, rtol=5e-3, atol=5e-3), (out, ref_bf16)

    # loose sanity check against the full-f32 original-module math (real index gather/scatter)
    ref_f32 = gnn_reference_f32(params, x_idx, edge_attr, src, dst, batch,
                                NUM_LAYER, N_GRAPHS)
    rel = jnp.linalg.norm((out - ref_f32).ravel()) / (jnp.linalg.norm(ref_f32.ravel()) + 1e-6)
    assert rel < 0.1, (float(rel), out, ref_f32)

    print("KERNEL_OK")
</pallas_src>

<mosaic_0001>
module attributes {stable_mosaic.version = 11 : i64} {
  func.func @_gnn_layer_kernel(%arg0: i32, %arg1: i32, %arg2: memref<3xf32, #tpu.memory_space<smem>>, %arg3: memref<1x16x128xf32, #tpu.memory_space<vmem>>, %arg4: memref<1x1x32x128xf32, #tpu.memory_space<vmem>>, %arg5: memref<1x32x1xi32, #tpu.memory_space<vmem>>, %arg6: memref<1x1x32xi32, #tpu.memory_space<vmem>>, %arg7: memref<1x16x1xi32, #tpu.memory_space<vmem>>, %arg8: memref<1x1x16xi32, #tpu.memory_space<vmem>>, %arg9: memref<1x2x1xf32, #tpu.memory_space<vmem>>, %arg10: memref<1x128x256xbf16, #tpu.memory_space<vmem>>, %arg11: memref<1x1x256xf32, #tpu.memory_space<vmem>>, %arg12: memref<1x256x128xbf16, #tpu.memory_space<vmem>>, %arg13: memref<1x1x128xf32, #tpu.memory_space<vmem>>, %arg14: memref<1x128x256xbf16, #tpu.memory_space<vmem>>, %arg15: memref<1x1x256xf32, #tpu.memory_space<vmem>>, %arg16: memref<1x256x128xbf16, #tpu.memory_space<vmem>>, %arg17: memref<1x1x128xf32, #tpu.memory_space<vmem>>, %arg18: memref<128x128xbf16, #tpu.memory_space<vmem>>, %arg19: memref<1x128xf32, #tpu.memory_space<vmem>>, %arg20: memref<1x2x128xf32, #tpu.memory_space<vmem>>, %arg21: memref<16x128xf32, #tpu.memory_space<vmem>>, %arg22: memref<2x128xf32, #tpu.memory_space<vmem>>) attributes {dimension_semantics = [#tpu.dimension_semantics<parallel>, #tpu.dimension_semantics<arbitrary>], iteration_bounds = array<i64: 2, 3>, scalar_prefetch = 0 : i64, scratch_operands = 2 : i64, tpu.core_type = #tpu.core_type<tc>, window_params = [{transform_indices = @transform_0, window_bounds = array<i64: 3>}, {transform_indices = @transform_1, window_bounds = array<i64: 1, 16, 128>}, {transform_indices = @transform_2, window_bounds = array<i64: 1, 1, 32, 128>}, {transform_indices = @transform_3, window_bounds = array<i64: 1, 32, 1>}, {transform_indices = @transform_4, window_bounds = array<i64: 1, 1, 32>}, {transform_indices = @transform_5, window_bounds = array<i64: 1, 16, 1>}, {transform_indices = @transform_6, window_bounds = array<i64: 1, 1, 16>}, {transform_indices = @transform_7, window_bounds = array<i64: 1, 2, 1>}, {transform_indices = @transform_8, window_bounds = array<i64: 1, 128, 256>}, {transform_indices = @transform_9, window_bounds = array<i64: 1, 1, 256>}, {transform_indices = @transform_10, window_bounds = array<i64: 1, 256, 128>}, {transform_indices = @transform_11, window_bounds = array<i64: 1, 1, 128>}, {transform_indices = @transform_12, window_bounds = array<i64: 1, 128, 256>}, {transform_indices = @transform_13, window_bounds = array<i64: 1, 1, 256>}, {transform_indices = @transform_14, window_bounds = array<i64: 1, 256, 128>}, {transform_indices = @transform_15, window_bounds = array<i64: 1, 1, 128>}, {pipeline_mode = #tpu.pipeline_mode<synchronous>, transform_indices = @transform_16, window_bounds = array<i64: 128, 128>}, {pipeline_mode = #tpu.pipeline_mode<synchronous>, transform_indices = @transform_17, window_bounds = array<i64: 1, 128>}, {transform_indices = @transform_18, window_bounds = array<i64: 1, 2, 128>}]} {
    %c0_i32 = arith.constant 0 : i32
    %0 = arith.cmpi eq, %arg1, %c0_i32 : i32
    %1 = arith.extui %0 : i1 to i32
    %c0_i32_0 = arith.constant 0 : i32
    %2 = arith.cmpi ne, %1, %c0_i32_0 : i32
    scf.if %2 {
      %c0_42 = arith.constant 0 : index
      %c0_43 = arith.constant 0 : index
      %c0_44 = arith.constant 0 : index
      %79 = vector.load %arg3[%c0_42, %c0_43, %c0_44] : memref<1x16x128xf32, #tpu.memory_space<vmem>>, vector<1x16x128xf32>
      %80 = vector.shape_cast %79 : vector<1x16x128xf32> to vector<16x128xf32>
      %c0_45 = arith.constant 0 : index
      %c0_46 = arith.constant 0 : index
      %81 = vector.load %arg21[%c0_45, %c0_46] : memref<16x128xf32, #tpu.memory_space<vmem>>, vector<16x128xf32>
      tpu.vector_store %arg21[%c0_45, %c0_46], %80 {strides = array<i32>} : memref<16x128xf32, #tpu.memory_space<vmem>>, vector<16x128xf32>,
      %cst_47 = arith.constant 0.000000e+00 : f32
      %82 = vector.broadcast %cst_47 : f32 to vector<2x128xf32>
      %c0_48 = arith.constant 0 : index
      %c0_49 = arith.constant 0 : index
      %83 = vector.load %arg22[%c0_48, %c0_49] : memref<2x128xf32, #tpu.memory_space<vmem>>, vector<2x128xf32>
      tpu.vector_store %arg22[%c0_48, %c0_49], %82 {strides = array<i32>} : memref<2x128xf32, #tpu.memory_space<vmem>>, vector<2x128xf32>,
    } else {
    }
    %c0 = arith.constant 0 : index
    %c0_1 = arith.constant 0 : index
    %c0_2 = arith.constant 0 : index
    %3 = vector.load %arg5[%c0, %c0_1, %c0_2] : memref<1x32x1xi32, #tpu.memory_space<vmem>>, vector<1x32x1xi32>
    %4 = vector.shape_cast %3 : vector<1x32x1xi32> to vector<32x1xi32>
    %5 = tpu.iota {dimensions = array<i32: 1>} : vector<32x16xi32>
    %6 = vector.broadcast %4 : vector<32x1xi32> to vector<32x16xi32>
    %7 = arith.cmpi eq, %6, %5 : vector<32x16xi32>
    %8 = arith.extui %7 : vector<32x16xi1> to vector<32x16xi32>
    %9 = arith.sitofp %8 : vector<32x16xi32> to vector<32x16xf32>
    %10 = arith.truncf %9 : vector<32x16xf32> to vector<32x16xbf16>
    %c0_3 = arith.constant 0 : index
    %c0_4 = arith.constant 0 : index
    %c0_5 = arith.constant 0 : index
    %11 = vector.load %arg6[%c0_3, %c0_4, %c0_5] : memref<1x1x32xi32, #tpu.memory_space<vmem>>, vector<1x1x32xi32>
    %12 = vector.shape_cast %11 : vector<1x1x32xi32> to vector<1x32xi32>
    %13 = tpu.iota {dimensions = array<i32: 0>} : vector<16x32xi32>
    %14 = vector.broadcast %12 : vector<1x32xi32> to vector<16x32xi32>
    %15 = arith.cmpi eq, %14, %13 : vector<16x32xi32>
    %16 = arith.extui %15 : vector<16x32xi1> to vector<16x32xi32>
    %17 = arith.sitofp %16 : vector<16x32xi32> to vector<16x32xf32>
    %18 = arith.truncf %17 : vector<16x32xf32> to vector<16x32xbf16>
    %c0_6 = arith.constant 0 : index
    %c0_7 = arith.constant 0 : index
    %c0_8 = arith.constant 0 : index
    %19 = vector.load %arg7[%c0_6, %c0_7, %c0_8] : memref<1x16x1xi32, #tpu.memory_space<vmem>>, vector<1x16x1xi32>
    %20 = vector.shape_cast %19 : vector<1x16x1xi32> to vector<16x1xi32>
    %21 = tpu.iota {dimensions = array<i32: 1>} : vector<16x2xi32>
    %22 = vector.broadcast %20 : vector<16x1xi32> to vector<16x2xi32>
    %23 = arith.cmpi eq, %22, %21 : vector<16x2xi32>
    %24 = arith.extui %23 : vector<16x2xi1> to vector<16x2xi32>
    %25 = arith.sitofp %24 : vector<16x2xi32> to vector<16x2xf32>
    %26 = arith.truncf %25 : vector<16x2xf32> to vector<16x2xbf16>
    %c0_9 = arith.constant 0 : index
    %c0_10 = arith.constant 0 : index
    %c0_11 = arith.constant 0 : index
    %27 = vector.load %arg8[%c0_9, %c0_10, %c0_11] : memref<1x1x16xi32, #tpu.memory_space<vmem>>, vector<1x1x16xi32>
    %28 = vector.shape_cast %27 : vector<1x1x16xi32> to vector<1x16xi32>
    %29 = tpu.iota {dimensions = array<i32: 0>} : vector<2x16xi32>
    %30 = vector.broadcast %28 : vector<1x16xi32> to vector<2x16xi32>
    %31 = arith.cmpi eq, %30, %29 : vector<2x16xi32>
    %32 = arith.extui %31 : vector<2x16xi1> to vector<2x16xi32>
    %33 = arith.sitofp %32 : vector<2x16xi32> to vector<2x16xf32>
    %34 = arith.truncf %33 : vector<2x16xf32> to vector<2x16xbf16>
    %c0_12 = arith.constant 0 : index
    %c0_13 = arith.constant 0 : index
    %35 = vector.load %arg21[%c0_12, %c0_13] : memref<16x128xf32, #tpu.memory_space<vmem>>, vector<16x128xf32>
    %c0_14 = arith.constant 0 : index
    %c0_15 = arith.constant 0 : index
    %36 = vector.load %arg22[%c0_14, %c0_15] : memref<2x128xf32, #tpu.memory_space<vmem>>, vector<2x128xf32>
    %37 = arith.truncf %36 : vector<2x128xf32> to vector<2x128xbf16>
    %cst = arith.constant dense<0.000000e+00> : vector<16x128xf32>
    %38 = tpu.matmul %26, %37, %cst {dimension_numbers = #tpu.dot_dimension_numbers<[1], [0], [0], [1], [0, 0, 1, 1], [], []>} : vector<16x2xbf16>, vector<2x128xbf16>, vector<16x128xf32> -> vector<16x128xf32>
    %39 = arith.addf %35, %38 : vector<16x128xf32>
    %40 = arith.truncf %39 : vector<16x128xf32> to vector<16x128xbf16>
    %41 = arith.index_cast %arg1 : i32 to index
    %42 = memref.load %arg2[%41] : memref<3xf32, #tpu.memory_space<smem>>
    %cst_16 = arith.constant dense<0.000000e+00> : vector<32x128xf32>
    %43 = tpu.matmul %10, %40, %cst_16 {dimension_numbers = #tpu.dot_dimension_numbers<[1], [0], [0], [1], [0, 0, 1, 1], [], []>} : vector<32x16xbf16>, vector<16x128xbf16>, vector<32x128xf32> -> vector<32x128xf32>
    %c0_17 = arith.constant 0 : index
    %c0_18 = arith.constant 0 : index
    %c0_19 = arith.constant 0 : index
    %c0_20 = arith.constant 0 : index
    %44 = vector.load %arg4[%c0_17, %c0_18, %c0_19, %c0_20] : memref<1x1x32x128xf32, #tpu.memory_space<vmem>>, vector<1x1x32x128xf32>
    %45 = vector.shape_cast %44 : vector<1x1x32x128xf32> to vector<32x128xf32>
    %46 = arith.addf %43, %45 : vector<32x128xf32>
    %cst_21 = arith.constant 0.000000e+00 : f32
    %47 = vector.broadcast %cst_21 : f32 to vector<32x128xf32>
    %48 = arith.maximumf %46, %47 : vector<32x128xf32>
    %cst_22 = arith.constant 1.000000e+00 : f32
    %49 = arith.addf %cst_22, %42 : f32
    %50 = vector.broadcast %49 : f32 to vector<16x128xf32>
    %51 = arith.mulf %50, %39 : vector<16x128xf32>
    %52 = arith.truncf %48 : vector<32x128xf32> to vector<32x128xbf16>
    %cst_23 = arith.constant dense<0.000000e+00> : vector<16x128xf32>
    %53 = tpu.matmul %18, %52, %cst_23 {dimension_numbers = #tpu.dot_dimension_numbers<[1], [0], [0], [1], [0, 0, 1, 1], [], []>} : vector<16x32xbf16>, vector<32x128xbf16>, vector<16x128xf32> -> vector<16x128xf32>
    %54 = arith.addf %51, %53 : vector<16x128xf32>
    %55 = arith.truncf %54 : vector<16x128xf32> to vector<16x128xbf16>
    %c0_24 = arith.constant 0 : index
    %c0_25 = arith.constant 0 : index
    %c0_26 = arith.constant 0 : index
    %56 = vector.load %arg10[%c0_24, %c0_25, %c0_26] : memref<1x128x256xbf16, #tpu.memory_space<vmem>>, vector<1x128x256xbf16>
    %57 = vector.shape_cast %56 : vector<1x128x256xbf16> to vector<128x256xbf16>
    %cst_27 = arith.constant dense<0.000000e+00> : vector<16x256xf32>
    %58 = tpu.matmul %55, %57, %cst_27 {dimension_numbers = #tpu.dot_dimension_numbers<[1], [0], [0], [1], [0, 0, 1, 1], [], []>} : vector<16x128xbf16>, vector<128x256xbf16>, vector<16x256xf32> -> vector<16x256xf32>
    %c0_28 = arith.constant 0 : index
    %c0_29 = arith.constant 0 : index
    %c0_30 = arith.constant 0 : index
    %59 = vector.load %arg11[%c0_28, %c0_29, %c0_30] : memref<1x1x256xf32, #tpu.memory_space<vmem>>, vector<1x1x256xf32>
    %60 = vector.shape_cast %59 : vector<1x1x256xf32> to vector<1x256xf32>
    %61 = vector.broadcast %60 : vector<1x256xf32> to vector<16x256xf32>
    %62 = arith.addf %58, %61 : vector<16x256xf32>
    %cst_31 = arith.constant 0.000000e+00 : f32
    %63 = vector.broadcast %cst_31 : f32 to vector<16x256xf32>
    %64 = arith.maximumf %62, %63 : vector<16x256xf32>
    %65 = arith.truncf %64 : vector<16x256xf32> to vector<16x256xbf16>
    %c0_32 = arith.constant 0 : index
    %c0_33 = arith.constant 0 : index
    %c0_34 = arith.constant 0 : index
    %66 = vector.load %arg12[%c0_32, %c0_33, %c0_34] : memref<1x256x128xbf16, #tpu.memory_space<vmem>>, vector<1x256x128xbf16>
    %67 = vector.shape_cast %66 : vector<1x256x128xbf16> to vector<256x128xbf16>
    %cst_35 = arith.constant dense<0.000000e+00> : vector<16x128xf32>
    %68 = tpu.matmul %65, %67, %cst_35 {dimension_numbers = #tpu.dot_dimension_numbers<[1], [0], [0], [1], [0, 0, 1, 1], [], []>} : vector<16x256xbf16>, vector<256x128xbf16>, vector<16x128xf32> -> vector<16x128xf32>
    %c0_36 = arith.constant 0 : index
    %c0_37 = arith.constant 0 : index
    %c0_38 = arith.constant 0 : index
    %69 = vector.load %arg13[%c0_36, %c0_37, %c0_38] : memref<1x1x128xf32, #tpu.memory_space<vmem>>, vector<1x1x128xf32>
    %70 = vector.shape_cast %69 : vector<1x1x128xf32> to vector<1x128xf32>
    %71 = vector.broadcast %70 : vector<1x128xf32> to vector<16x128xf32>
    %72 = arith.addf %68, %71 : vector<16x128xf32>
    %c2_i32 = arith.constant 2 : i32
    %73 = arith.cmpi ne, %arg1, %c2_i32 : i32
    %74 = arith.extui %73 : i1 to i32
    %c0_i32_39 = arith.constant 0 : i32
    %75 = arith.cmpi ne, %74, %c0_i32_39 : i32
    scf.if %75 {
      %cst_42 = arith.constant 0.000000e+00 : f32
      %79 = vector.broadcast %cst_42 : f32 to vector<16x128xf32>
      %80 = arith.maximumf %72, %79 : vector<16x128xf32>
      %c0_43 = arith.constant 0 : index
      %c0_44 = arith.constant 0 : index
      %81 = vector.load %arg21[%c0_43, %c0_44] : memref<16x128xf32, #tpu.memory_space<vmem>>, vector<16x128xf32>
      tpu.vector_store %arg21[%c0_43, %c0_44], %80 {strides = array<i32>} : memref<16x128xf32, #tpu.memory_space<vmem>>, vector<16x128xf32>,
      %cst_45 = arith.constant dense<0.000000e+00> : vector<2x128xf32>
      %82 = tpu.matmul %34, %40, %cst_45 {dimension_numbers = #tpu.dot_dimension_numbers<[1], [0], [0], [1], [0, 0, 1, 1], [], []>} : vector<2x16xbf16>, vector<16x128xbf16>, vector<2x128xf32> -> vector<2x128xf32>
      %83 = arith.addf %82, %36 : vector<2x128xf32>
      %84 = arith.truncf %83 : vector<2x128xf32> to vector<2x128xbf16>
      %c0_46 = arith.constant 0 : index
      %c0_47 = arith.constant 0 : index
      %c0_48 = arith.constant 0 : index
      %85 = vector.load %arg14[%c0_46, %c0_47, %c0_48] : memref<1x128x256xbf16, #tpu.memory_space<vmem>>, vector<1x128x256xbf16>
      %86 = vector.shape_cast %85 : vector<1x128x256xbf16> to vector<128x256xbf16>
      %cst_49 = arith.constant dense<0.000000e+00> : vector<2x256xf32>
      %87 = tpu.matmul %84, %86, %cst_49 {dimension_numbers = #tpu.dot_dimension_numbers<[1], [0], [0], [1], [0, 0, 1, 1], [], []>} : vector<2x128xbf16>, vector<128x256xbf16>, vector<2x256xf32> -> vector<2x256xf32>
      %c0_50 = arith.constant 0 : index
      %c0_51 = arith.constant 0 : index
      %c0_52 = arith.constant 0 : index
      %88 = vector.load %arg15[%c0_50, %c0_51, %c0_52] : memref<1x1x256xf32, #tpu.memory_space<vmem>>, vector<1x1x256xf32>
      %89 = vector.shape_cast %88 : vector<1x1x256xf32> to vector<1x256xf32>
      %90 = vector.broadcast %89 : vector<1x256xf32> to vector<2x256xf32>
      %91 = arith.addf %87, %90 : vector<2x256xf32>
      %cst_53 = arith.constant 0.000000e+00 : f32
      %92 = vector.broadcast %cst_53 : f32 to vector<2x256xf32>
      %93 = arith.maximumf %91, %92 : vector<2x256xf32>
      %94 = arith.truncf %93 : vector<2x256xf32> to vector<2x256xbf16>
      %c0_54 = arith.constant 0 : index
      %c0_55 = arith.constant 0 : index
      %c0_56 = arith.constant 0 : index
      %95 = vector.load %arg16[%c0_54, %c0_55, %c0_56] : memref<1x256x128xbf16, #tpu.memory_space<vmem>>, vector<1x256x128xbf16>
      %96 = vector.shape_cast %95 : vector<1x256x128xbf16> to vector<256x128xbf16>
      %cst_57 = arith.constant dense<0.000000e+00> : vector<2x128xf32>
      %97 = tpu.matmul %94, %96, %cst_57 {dimension_numbers = #tpu.dot_dimension_numbers<[1], [0], [0], [1], [0, 0, 1, 1], [], []>} : vector<2x256xbf16>, vector<256x128xbf16>, vector<2x128xf32> -> vector<2x128xf32>
      %c0_58 = arith.constant 0 : index
      %c0_59 = arith.constant 0 : index
      %c0_60 = arith.constant 0 : index
      %98 = vector.load %arg17[%c0_58, %c0_59, %c0_60] : memref<1x1x128xf32, #tpu.memory_space<vmem>>, vector<1x1x128xf32>
      %99 = vector.shape_cast %98 : vector<1x1x128xf32> to vector<1x128xf32>
      %100 = vector.broadcast %99 : vector<1x128xf32> to vector<2x128xf32>
      %101 = arith.addf %97, %100 : vector<2x128xf32>
      %cst_61 = arith.constant 0.000000e+00 : f32
      %102 = vector.broadcast %cst_61 : f32 to vector<2x128xf32>
      %103 = arith.maximumf %101, %102 : vector<2x128xf32>
      %c0_62 = arith.constant 0 : index
      %c0_63 = arith.constant 0 : index
      %104 = vector.load %arg22[%c0_62, %c0_63] : memref<2x128xf32, #tpu.memory_space<vmem>>, vector<2x128xf32>
      tpu.vector_store %arg22[%c0_62, %c0_63], %103 {strides = array<i32>} : memref<2x128xf32, #tpu.memory_space<vmem>>, vector<2x128xf32>,
    } else {
    }
    %c2_i32_40 = arith.constant 2 : i32
    %76 = arith.cmpi eq, %arg1, %c2_i32_40 : i32
    %77 = arith.extui %76 : i1 to i32
    %c0_i32_41 = arith.constant 0 : i32
    %78 = arith.cmpi ne, %77, %c0_i32_41 : i32
    scf.if %78 {
      %79 = arith.truncf %72 : vector<16x128xf32> to vector<16x128xbf16>
      %cst_42 = arith.constant dense<0.000000e+00> : vector<2x128xf32>
      %80 = tpu.matmul %34, %79, %cst_42 {dimension_numbers = #tpu.dot_dimension_numbers<[1], [0], [0], [1], [0, 0, 1, 1], [], []>} : vector<2x16xbf16>, vector<16x128xbf16>, vector<2x128xf32> -> vector<2x128xf32>
      %c0_43 = arith.constant 0 : index
      %c0_44 = arith.constant 0 : index
      %c0_45 = arith.constant 0 : index
      %81 = vector.load %arg9[%c0_43, %c0_44, %c0_45] : memref<1x2x1xf32, #tpu.memory_space<vmem>>, vector<1x2x1xf32>
      %82 = vector.shape_cast %81 : vector<1x2x1xf32> to vector<2x1xf32>
      %83 = vector.broadcast %82 : vector<2x1xf32> to vector<2x128xf32>
      %84 = arith.mulf %80, %83 : vector<2x128xf32>
      %85 = arith.truncf %84 : vector<2x128xf32> to vector<2x128xbf16>
      %c0_46 = arith.constant 0 : index
      %c0_47 = arith.constant 0 : index
      %86 = vector.load %arg18[%c0_46, %c0_47] : memref<128x128xbf16, #tpu.memory_space<vmem>>, vector<128x128xbf16>
      %cst_48 = arith.constant dense<0.000000e+00> : vector<2x128xf32>
      %87 = tpu.matmul %85, %86, %cst_48 {dimension_numbers = #tpu.dot_dimension_numbers<[1], [0], [0], [1], [0, 0, 1, 1], [], []>} : vector<2x128xbf16>, vector<128x128xbf16>, vector<2x128xf32> -> vector<2x128xf32>
      %c0_49 = arith.constant 0 : index
      %c0_50 = arith.constant 0 : index
      %88 = vector.load %arg19[%c0_49, %c0_50] : memref<1x128xf32, #tpu.memory_space<vmem>>, vector<1x128xf32>
      %89 = vector.broadcast %88 : vector<1x128xf32> to vector<2x128xf32>
      %90 = arith.addf %87, %89 : vector<2x128xf32>
      %c0_51 = arith.constant 0 : index
      %c0_52 = arith.constant 0 : index
      %c0_53 = arith.constant 0 : index
      %91 = vector.load %arg20[%c0_51, %c0_52, %c0_53] : memref<1x2x128xf32, #tpu.memory_space<vmem>>, vector<1x2x128xf32>
      %92 = vector.shape_cast %91 : vector<1x2x128xf32> to vector<2x128xf32>
      %93 = vector.shape_cast %90 : vector<2x128xf32> to vector<1x2x128xf32>
      tpu.vector_store %arg20[%c0_51, %c0_52, %c0_53], %93 {strides = array<i32>} : memref<1x2x128xf32, #tpu.memory_space<vmem>>, vector<1x2x128xf32>,
    } else {
    }
    return
  }
  func.func @transform_0(%arg0: i32, %arg1: i32) -> i32 {
    %c0_i32 = arith.constant 0 : i32
    %c0_i32_0 = arith.constant 0 : i32
    return %c0_i32 : i32
  }
  func.func @transform_1(%arg0: i32, %arg1: i32) -> (i32, i32, i32) {
    %c0_i32 = arith.constant 0 : i32
    %c0_i32_0 = arith.constant 0 : i32
    %c0_i32_1 = arith.constant 0 : i32
    return %arg0, %c0_i32, %c0_i32_0 : i32, i32, i32
  }
  func.func @transform_2(%arg0: i32, %arg1: i32) -> (i32, i32, i32, i32) {
    %c0_i32 = arith.constant 0 : i32
    %c0_i32_0 = arith.constant 0 : i32
    %c0_i32_1 = arith.constant 0 : i32
    return %arg0, %arg1, %c0_i32, %c0_i32_0 : i32, i32, i32, i32
  }
  func.func @transform_3(%arg0: i32, %arg1: i32) -> (i32, i32, i32) {
    %c0_i32 = arith.constant 0 : i32
    %c0_i32_0 = arith.constant 0 : i32
    %c0_i32_1 = arith.constant 0 : i32
    return %arg0, %c0_i32, %c0_i32_0 : i32, i32, i32
  }
  func.func @transform_4(%arg0: i32, %arg1: i32) -> (i32, i32, i32) {
    %c0_i32 = arith.constant 0 : i32
    %c0_i32_0 = arith.constant 0 : i32
    %c0_i32_1 = arith.constant 0 : i32
    return %arg0, %c0_i32, %c0_i32_0 : i32, i32, i32
  }
  func.func @transform_5(%arg0: i32, %arg1: i32) -> (i32, i32, i32) {
    %c0_i32 = arith.constant 0 : i32
    %c0_i32_0 = arith.constant 0 : i32
    %c0_i32_1 = arith.constant 0 : i32
    return %arg0, %c0_i32, %c0_i32_0 : i32, i32, i32
  }
  func.func @transform_6(%arg0: i32, %arg1: i32) -> (i32, i32, i32) {
    %c0_i32 = arith.constant 0 : i32
    %c0_i32_0 = arith.constant 0 : i32
    %c0_i32_1 = arith.constant 0 : i32
    return %arg0, %c0_i32, %c0_i32_0 : i32, i32, i32
  }
  func.func @transform_7(%arg0: i32, %arg1: i32) -> (i32, i32, i32) {
    %c0_i32 = arith.constant 0 : i32
    %c0_i32_0 = arith.constant 0 : i32
    %c0_i32_1 = arith.constant 0 : i32
    return %arg0, %c0_i32, %c0_i32_0 : i32, i32, i32
  }
  func.func @transform_8(%arg0: i32, %arg1: i32) -> (i32, i32, i32) {
    %c0_i32 = arith.constant 0 : i32
    %c0_i32_0 = arith.constant 0 : i32
    %c0_i32_1 = arith.constant 0 : i32
    return %arg1, %c0_i32, %c0_i32_0 : i32, i32, i32
  }
  func.func @transform_9(%arg0: i32, %arg1: i32) -> (i32, i32, i32) {
    %c0_i32 = arith.constant 0 : i32
    %c0_i32_0 = arith.constant 0 : i32
    %c0_i32_1 = arith.constant 0 : i32
    return %arg1, %c0_i32, %c0_i32_0 : i32, i32, i32
  }
  func.func @transform_10(%arg0: i32, %arg1: i32) -> (i32, i32, i32) {
    %c0_i32 = arith.constant 0 : i32
    %c0_i32_0 = arith.constant 0 : i32
    %c0_i32_1 = arith.constant 0 : i32
    return %arg1, %c0_i32, %c0_i32_0 : i32, i32, i32
  }
  func.func @transform_11(%arg0: i32, %arg1: i32) -> (i32, i32, i32) {
    %c0_i32 = arith.constant 0 : i32
    %c0_i32_0 = arith.constant 0 : i32
    %c0_i32_1 = arith.constant 0 : i32
    return %arg1, %c0_i32, %c0_i32_0 : i32, i32, i32
  }
  func.func @transform_12(%arg0: i32, %arg1: i32) -> (i32, i32, i32) {
    %c0_i32 = arith.constant 0 : i32
    %c0_i32_0 = arith.constant 0 : i32
    %c0_i32_1 = arith.constant 0 : i32
    return %arg1, %c0_i32, %c0_i32_0 : i32, i32, i32
  }
  func.func @transform_13(%arg0: i32, %arg1: i32) -> (i32, i32, i32) {
    %c0_i32 = arith.constant 0 : i32
    %c0_i32_0 = arith.constant 0 : i32
    %c0_i32_1 = arith.constant 0 : i32
    return %arg1, %c0_i32, %c0_i32_0 : i32, i32, i32
  }
  func.func @transform_14(%arg0: i32, %arg1: i32) -> (i32, i32, i32) {
    %c0_i32 = arith.constant 0 : i32
    %c0_i32_0 = arith.constant 0 : i32
    %c0_i32_1 = arith.constant 0 : i32
    return %arg1, %c0_i32, %c0_i32_0 : i32, i32, i32
  }
  func.func @transform_15(%arg0: i32, %arg1: i32) -> (i32, i32, i32) {
    %c0_i32 = arith.constant 0 : i32
    %c0_i32_0 = arith.constant 0 : i32
    %c0_i32_1 = arith.constant 0 : i32
    return %arg1, %c0_i32, %c0_i32_0 : i32, i32, i32
  }
  func.func @transform_16(%arg0: i32, %arg1: i32) -> (i32, i32) {
    %c0_i32 = arith.constant 0 : i32
    %c0_i32_0 = arith.constant 0 : i32
    %c0_i32_1 = arith.constant 0 : i32
    return %c0_i32, %c0_i32_0 : i32, i32
  }
  func.func @transform_17(%arg0: i32, %arg1: i32) -> (i32, i32) {
    %c0_i32 = arith.constant 0 : i32
    %c0_i32_0 = arith.constant 0 : i32
    %c0_i32_1 = arith.constant 0 : i32
    return %c0_i32, %c0_i32_0 : i32, i32
  }
  func.func @transform_18(%arg0: i32, %arg1: i32) -> (i32, i32, i32) {
    %c0_i32 = arith.constant 0 : i32
    %c0_i32_0 = arith.constant 0 : i32
    %c0_i32_1 = arith.constant 0 : i32
    return %arg0, %c0_i32, %c0_i32_0 : i32, i32, i32
  }
}

</mosaic_0001>

<llo_original>
// kernel: tpu_custom_call.1
$region0: #{tpu_custom_call.1}
  #allocation0 [shape = 'u32[]', space=smem, size = 0x4, offset = 0x4, fixed_abs, tag = 'smem constant byte address 0x4 - core index']
  #allocation1 [shape = 'u32[144,128]{1,0:T(1,128)}', space=vmem, size = 0x12000, scoped, tag = 'internal scratch']
  #allocation2 [shape = 'f32[16,128]{1,0:T(8,128)}', space=vmem, size = 0x2000, scoped, tag = 'scratch operand']
  #allocation3 [shape = 'f32[2,128]{1,0:T(2,128)}', space=vmem, size = 0x400, scoped, tag = 'scratch operand']
  %s0 = inlined_call_operand.vmem [shape: f32[3], index: 0, kind: input, shape index: {}]
  %s1 = inlined_call_operand.vmem [shape: f32[2,16,128], index: 1, kind: input, shape index: {}]
  %s2 = inlined_call_operand.hbm [shape: f32[2,3,32,128], index: 2, kind: input, shape index: {}]
  %s3 = inlined_call_operand.vmem [shape: s32[2,32,1], index: 3, kind: input, shape index: {}]
  %s4 = inlined_call_operand.vmem [shape: s32[2,1,32], index: 4, kind: input, shape index: {}]
  %s5 = inlined_call_operand.vmem [shape: s32[2,16,1], index: 5, kind: input, shape index: {}]
  %s6 = inlined_call_operand.vmem [shape: s32[2,1,16], index: 6, kind: input, shape index: {}]
  %s7 = inlined_call_operand.vmem [shape: f32[2,2,1], index: 7, kind: input, shape index: {}]
  %s8 = inlined_call_operand.hbm [shape: bf16[3,128,256], index: 8, kind: input, shape index: {}]
  %s9 = inlined_call_operand.vmem [shape: f32[3,1,256], index: 9, kind: input, shape index: {}]
  %s10 = inlined_call_operand.hbm [shape: bf16[3,256,128], index: 10, kind: input, shape index: {}]
  %s11 = inlined_call_operand.vmem [shape: f32[3,1,128], index: 11, kind: input, shape index: {}]
  %s12 = inlined_call_operand.hbm [shape: bf16[3,128,256], index: 12, kind: input, shape index: {}]
  %s13 = inlined_call_operand.vmem [shape: f32[3,1,256], index: 13, kind: input, shape index: {}]
  %s14 = inlined_call_operand.hbm [shape: bf16[3,256,128], index: 14, kind: input, shape index: {}]
  %s15 = inlined_call_operand.vmem [shape: f32[3,1,128], index: 15, kind: input, shape index: {}]
  %s16 = inlined_call_operand.vmem [shape: bf16[128,128], index: 16, kind: input, shape index: {}]
  %s17 = inlined_call_operand.vmem [shape: f32[1,128], index: 17, kind: input, shape index: {}]
  %s18 = inlined_call_operand.hbm [shape: f32[2,2,128], index: 18, kind: output, shape index: {}]
  %s19 = sld [smem:[#allocation0]]
  $region141: #{tpu_custom_call.1} parent=0
    _
  %s21 = ssub.s32 1, %s19
  %s22 = scalar_select 0, %s21, %s19
  $region1: #{tpu_custom_call.1} parent=0
    #allocation4 [shape = 'u8[512]{0}', space=smem, size = 0x200, scoped, tag = 'input window, operand 0, single buffered']
    #allocation5 [shape = 's32[2]{0}', space=sflag, size = 0x8, scoped, tag = 'scoped memory for tpu_custom_call.1']
    #allocation6 [shape = 's32[2]{0}', space=sflag, size = 0x8, scoped, tag = 'scoped memory for tpu_custom_call.1']
    #allocation7 [shape = 's32[2]{0}', space=sflag, size = 0x8, scoped, tag = 'scoped memory for tpu_custom_call.1']
    #allocation8 [shape = 'u8[32768]{0}', space=vmem, size = 0x8000, scoped, tag = 'input window, operand 2']
    #allocation9 [shape = 'u8[131072]{0}', space=vmem, size = 0x20000, scoped, tag = 'input window, operand 8']
    #allocation10 [shape = 's32[2]{0}', space=sflag, size = 0x8, scoped, tag = 'scoped memory for tpu_custom_call.1']
    #allocation11 [shape = 'u8[131072]{0}', space=vmem, size = 0x20000, scoped, tag = 'input window, operand 10']
    #allocation12 [shape = 'u8[131072]{0}', space=vmem, size = 0x20000, scoped, tag = 'input window, operand 12']
    #allocation13 [shape = 's32[2]{0}', space=sflag, size = 0x8, scoped, tag = 'scoped memory for tpu_custom_call.1']
    #allocation14 [shape = 'u8[131072]{0}', space=vmem, size = 0x20000, scoped, tag = 'input window, operand 14']
    #allocation15 [shape = 'u8[2048]{0}', space=vmem, size = 0x800, scoped, tag = 'output window, operand 0']
    %23 = vsyncpa [#allocation7], 0
    %24 = vsyncpa [#allocation5], 0
    %s25 = scalar_lea.sflag [#allocation5], 1
    %26 = vsyncpa %s25, 0
    %27 = vsyncpa [#allocation10], 0
    %s28 = scalar_lea.sflag [#allocation10], 1
    %29 = vsyncpa %s28, 0
    %30 = vsyncpa [#allocation13], 0
    %s31 = scalar_lea.sflag [#allocation13], 1
    %32 = vsyncpa %s31, 0
    %33 = vsyncpa [#allocation6], 0
    %s34 = scalar_lea.sflag [#allocation6], 1
    %35 = vsyncpa %s34, 0
    loop: start=0, step=1, limit=8
    $region2: #{tpu_custom_call.1} parent=1 // loop_pre_header
      _
    $region3: #{tpu_custom_call.1} parent=1 // loop_header
      %s37 = sphi 0, %s41
      %p38 = scmp.ge.s32.totalorder %s37, 8
      %s44 = sphi 0, %s56
      %s45 = sphi 0, %s52
      %s46 = sphi 0, %s44
      %s47 = sphi 0, %s45
      %s48 = sphi 0, %s46
      %s49 = sphi 0, %s47
      %s57 = sphi 0, %s57
      %s59 = sphi 0, %s57
      %s60 = sphi 0, %s59
      %s74 = sphi 0, %s60
      %s80 = sphi 0, %s82
      %s83 = sphi 0, %s80
      %s84 = sphi 0, %s83
      %s100 = sphi 0, %s84
      %s108 = sphi 0, %s110
      %s111 = sphi 0, %s108
      %s112 = sphi 0, %s111
      %s128 = sphi 0, %s112
      %s134 = sphi 0, %s136
      %s137 = sphi 0, %s134
      %s138 = sphi 0, %s137
      %s154 = sphi 0, %s138
      %s160 = sphi 0, %s162
      %s163 = sphi 0, %s160
      %s164 = sphi 0, %s163
      %s180 = sphi 0, %s164
      %s186 = sphi 0, %s188
      %s189 = sphi 0, %s186
      %s190 = sphi 0, %s189
      %s206 = sphi 0, %s190
      %s212 = sphi 0, %s214
      %s215 = sphi 0, %s212
      %s216 = sphi 0, %s215
      %s232 = sphi 0, %s216
      %s238 = sphi 0, %s240
      %s241 = sphi 0, %s238
      %s242 = sphi 0, %s241
      %s258 = sphi 0, %s242
      %s264 = sphi 0, %s266
      %s267 = sphi 0, %s264
      %s268 = sphi 0, %s267
      %s284 = sphi 0, %s268
      %s290 = sphi 0, %s292
      %s293 = sphi 0, %s290
      %s294 = sphi 0, %s293
      %s310 = sphi 0, %s294
      %s316 = sphi 0, %s318
      %s319 = sphi 0, %s316
      %s320 = sphi 0, %s319
      %s336 = sphi 0, %s320
      %s342 = sphi 0, %s344
      %s345 = sphi 0, %s342
      %s346 = sphi 0, %s345
      %s362 = sphi 0, %s346
      %s368 = sphi 0, %s370
      %s371 = sphi 0, %s368
      %s372 = sphi 0, %s371
      %s388 = sphi 0, %s372
      %s394 = sphi 0, %s396
      %s397 = sphi 0, %s394
      %s398 = sphi 0, %s397
      %s414 = sphi 0, %s398
      %s420 = sphi 0, %s422
      %s423 = sphi 0, %s420
      %s424 = sphi 0, %s423
      %s440 = sphi 0, %s424
      %s446 = sphi 0, %s448
      %s449 = sphi 0, %s446
      %s450 = sphi 0, %s449
      %s466 = sphi 0, %s450
      %s470 = sphi 0, %s470
      %s472 = sphi 0, %s470
      %s473 = sphi 0, %s472
      %s487 = sphi 0, %s473
      %s491 = sphi 0, %s491
      %s493 = sphi 0, %s491
      %s494 = sphi 0, %s493
      %s508 = sphi 0, %s494
      %s514 = sphi 0, %s516
      %s517 = sphi 0, %s514
      %s518 = sphi 0, %s517
      %s534 = sphi 0, %s518
    $region4: #{tpu_custom_call.1} parent=1 // loop_header_branch
      %40 = sbr.rel (%p38) target = $region8
    $region5: #{tpu_custom_call.1} parent=1 // loop_body
      %s42 = ssub.s32 %s37, 1
      %s43 = ssub.s32 %s37, 2
      %s50 = sadd.s32 1, %s45
      %p51 = scmp.ge.s32.totalorder %s50, 3
      %s52 = scalar_select %p51, 0, %s50
      %s53 = sadd.s32 1, %s44
      %s54 = scalar_select %p51, %s53, %s44
      %p55 = scmp.ge.s32.totalorder %s54, 2
      %s56 = scalar_select %p55, 0, %s54
      %s58 = sadd.s32 %s57, 1
      %p61 = scmp.eq.s32.totalorder %s37, 5
      %p62 = scmp.ne.s32.totalorder %s57, %s59
      %p63 = scmp.eq.s32.totalorder %s37, 0
      %p64 = por %p62, %p63
      %p65 = scmp.ne.s32.totalorder %s57, %s59
      %p66 = scmp.eq.s32.totalorder %s42, 5
      %p67 = por %p65, %p66
      %p68 = scmp.ne.s32.totalorder %s59, %s60
      %p69 = scmp.eq.s32.totalorder %s42, 0
      %p70 = por %p68, %p69
      %p71 = scmp.ne.s32.totalorder %s59, %s60
      %p72 = scmp.eq.s32.totalorder %s43, 5
      %p73 = por %p71, %p72
      %p75 = scmp.ne.s32.totalorder %s60, %s74
      %p76 = scmp.eq.s32.totalorder %s43, 0
      %p77 = por %p75, %p76
      %s78 = ssub.s32 %s44, %s56
      %p79 = scmp.eq.s32.totalorder %s78, 0
      %s81 = sadd.s32 %s80, 1
      %s82 = scalar_select %p79, %s80, %s81
      %p85 = pneg %p79
      %p86 = scmp.eq.s32.totalorder %s37, 5
      %p87 = por %p85, %p86
      %p88 = scmp.ne.s32.totalorder %s80, %s83
      %p89 = scmp.eq.s32.totalorder %s37, 0
      %p90 = por %p88, %p89
      %p91 = scmp.ne.s32.totalorder %s80, %s83
      %p92 = scmp.eq.s32.totalorder %s42, 5
      %p93 = por %p91, %p92
      %p94 = scmp.ne.s32.totalorder %s83, %s84
      %p95 = scmp.eq.s32.totalorder %s42, 0
      %p96 = por %p94, %p95
      %p97 = scmp.ne.s32.totalorder %s83, %s84
      %p98 = scmp.eq.s32.totalorder %s43, 5
      %p99 = por %p97, %p98
      %p101 = scmp.ne.s32.totalorder %s84, %s100
      %p102 = scmp.eq.s32.totalorder %s43, 0
      %p103 = por %p101, %p102
      %s104 = ssub.s32 %s44, %s56
      %s105 = ssub.s32 %s45, %s52
      %s106 = sor.u32 %s104, %s105
      %p107 = scmp.eq.s32.totalorder %s106, 0
      %s109 = sadd.s32 %s108, 1
      %s110 = scalar_select %p107, %s108, %s109
      %p113 = pneg %p107
      %p114 = scmp.eq.s32.totalorder %s37, 5
      %p115 = por %p113, %p114
      %p116 = scmp.ne.s32.totalorder %s108, %s111
      %p117 = scmp.eq.s32.totalorder %s37, 0
      %p118 = por %p116, %p117
      %p119 = scmp.ne.s32.totalorder %s108, %s111
      %p120 = scmp.eq.s32.totalorder %s42, 5
      %p121 = por %p119, %p120
      %p122 = scmp.ne.s32.totalorder %s111, %s112
      %p123 = scmp.eq.s32.totalorder %s42, 0
      %p124 = por %p122, %p123
      %p125 = scmp.ne.s32.totalorder %s111, %s112
      %p126 = scmp.eq.s32.totalorder %s43, 5
      %p127 = por %p125, %p126
      %p129 = scmp.ne.s32.totalorder %s112, %s128
      %p130 = scmp.eq.s32.totalorder %s43, 0
      %p131 = por %p129, %p130
      %s132 = ssub.s32 %s44, %s56
      %p133 = scmp.eq.s32.totalorder %s132, 0
      %s135 = sadd.s32 %s134, 1
      %s136 = scalar_select %p133, %s134, %s135
      %p139 = pneg %p133
      %p140 = scmp.eq.s32.totalorder %s37, 5
      %p141 = por %p139, %p140
      %p142 = scmp.ne.s32.totalorder %s134, %s137
      %p143 = scmp.eq.s32.totalorder %s37, 0
      %p144 = por %p142, %p143
      %p145 = scmp.ne.s32.totalorder %s134, %s137
      %p146 = scmp.eq.s32.totalorder %s42, 5
      %p147 = por %p145, %p146
      %p148 = scmp.ne.s32.totalorder %s137, %s138
      %p149 = scmp.eq.s32.totalorder %s42, 0
      %p150 = por %p148, %p149
      %p151 = scmp.ne.s32.totalorder %s137, %s138
      %p152 = scmp.eq.s32.totalorder %s43, 5
      %p153 = por %p151, %p152
      %p155 = scmp.ne.s32.totalorder %s138, %s154
      %p156 = scmp.eq.s32.totalorder %s43, 0
      %p157 = por %p155, %p156
      %s158 = ssub.s32 %s44, %s56
      %p159 = scmp.eq.s32.totalorder %s158, 0
      %s161 = sadd.s32 %s160, 1
      %s162 = scalar_select %p159, %s160, %s161
      %p165 = pneg %p159
      %p166 = scmp.eq.s32.totalorder %s37, 5
      %p167 = por %p165, %p166
      %p168 = scmp.ne.s32.totalorder %s160, %s163
      %p169 = scmp.eq.s32.totalorder %s37, 0
      %p170 = por %p168, %p169
      %p171 = scmp.ne.s32.totalorder %s160, %s163
      %p172 = scmp.eq.s32.totalorder %s42, 5
      %p173 = por %p171, %p172
      %p174 = scmp.ne.s32.totalorder %s163, %s164
      %p175 = scmp.eq.s32.totalorder %s42, 0
      %p176 = por %p174, %p175
      %p177 = scmp.ne.s32.totalorder %s163, %s164
      %p178 = scmp.eq.s32.totalorder %s43, 5
      %p179 = por %p177, %p178
      %p181 = scmp.ne.s32.totalorder %s164, %s180
      %p182 = scmp.eq.s32.totalorder %s43, 0
      %p183 = por %p181, %p182
      %s184 = ssub.s32 %s44, %s56
      %p185 = scmp.eq.s32.totalorder %s184, 0
      %s187 = sadd.s32 %s186, 1
      %s188 = scalar_select %p185, %s186, %s187
      %p191 = pneg %p185
      %p192 = scmp.eq.s32.totalorder %s37, 5
      %p193 = por %p191, %p192
      %p194 = scmp.ne.s32.totalorder %s186, %s189
      %p195 = scmp.eq.s32.totalorder %s37, 0
      %p196 = por %p194, %p195
      %p197 = scmp.ne.s32.totalorder %s186, %s189
      %p198 = scmp.eq.s32.totalorder %s42, 5
      %p199 = por %p197, %p198
      %p200 = scmp.ne.s32.totalorder %s189, %s190
      %p201 = scmp.eq.s32.totalorder %s42, 0
      %p202 = por %p200, %p201
      %p203 = scmp.ne.s32.totalorder %s189, %s190
      %p204 = scmp.eq.s32.totalorder %s43, 5
      %p205 = por %p203, %p204
      %p207 = scmp.ne.s32.totalorder %s190, %s206
      %p208 = scmp.eq.s32.totalorder %s43, 0
      %p209 = por %p207, %p208
      %s210 = ssub.s32 %s44, %s56
      %p211 = scmp.eq.s32.totalorder %s210, 0
      %s213 = sadd.s32 %s212, 1
      %s214 = scalar_select %p211, %s212, %s213
      %p217 = pneg %p211
      %p218 = scmp.eq.s32.totalorder %s37, 5
      %p219 = por %p217, %p218
      %p220 = scmp.ne.s32.totalorder %s212, %s215
      %p221 = scmp.eq.s32.totalorder %s37, 0
      %p222 = por %p220, %p221
      %p223 = scmp.ne.s32.totalorder %s212, %s215
      %p224 = scmp.eq.s32.totalorder %s42, 5
      %p225 = por %p223, %p224
      %p226 = scmp.ne.s32.totalorder %s215, %s216
      %p227 = scmp.eq.s32.totalorder %s42, 0
      %p228 = por %p226, %p227
      %p229 = scmp.ne.s32.totalorder %s215, %s216
      %p230 = scmp.eq.s32.totalorder %s43, 5
      %p231 = por %p229, %p230
      %p233 = scmp.ne.s32.totalorder %s216, %s232
      %p234 = scmp.eq.s32.totalorder %s43, 0
      %p235 = por %p233, %p234
      %s236 = ssub.s32 %s44, %s56
      %p237 = scmp.eq.s32.totalorder %s236, 0
      %s239 = sadd.s32 %s238, 1
      %s240 = scalar_select %p237, %s238, %s239
      %p243 = pneg %p237
      %p244 = scmp.eq.s32.totalorder %s37, 5
      %p245 = por %p243, %p244
      %p246 = scmp.ne.s32.totalorder %s238, %s241
      %p247 = scmp.eq.s32.totalorder %s37, 0
      %p248 = por %p246, %p247
      %p249 = scmp.ne.s32.totalorder %s238, %s241
      %p250 = scmp.eq.s32.totalorder %s42, 5
      %p251 = por %p249, %p250
      %p252 = scmp.ne.s32.totalorder %s241, %s242
      %p253 = scmp.eq.s32.totalorder %s42, 0
      %p254 = por %p252, %p253
      %p255 = scmp.ne.s32.totalorder %s241, %s242
      %p256 = scmp.eq.s32.totalorder %s43, 5
      %p257 = por %p255, %p256
      %p259 = scmp.ne.s32.totalorder %s242, %s258
      %p260 = scmp.eq.s32.totalorder %s43, 0
      %p261 = por %p259, %p260
      %s262 = ssub.s32 %s45, %s52
      %p263 = scmp.eq.s32.totalorder %s262, 0
      %s265 = sadd.s32 %s264, 1
      %s266 = scalar_select %p263, %s264, %s265
      %p269 = pneg %p263
      %p270 = scmp.eq.s32.totalorder %s37, 5
      %p271 = por %p269, %p270
      %p272 = scmp.ne.s32.totalorder %s264, %s267
      %p273 = scmp.eq.s32.totalorder %s37, 0
      %p274 = por %p272, %p273
      %p275 = scmp.ne.s32.totalorder %s264, %s267
      %p276 = scmp.eq.s32.totalorder %s42, 5
      %p277 = por %p275, %p276
      %p278 = scmp.ne.s32.totalorder %s267, %s268
      %p279 = scmp.eq.s32.totalorder %s42, 0
      %p280 = por %p278, %p279
      %p281 = scmp.ne.s32.totalorder %s267, %s268
      %p282 = scmp.eq.s32.totalorder %s43, 5
      %p283 = por %p281, %p282
      %p285 = scmp.ne.s32.totalorder %s268, %s284
      %p286 = scmp.eq.s32.totalorder %s43, 0
      %p287 = por %p285, %p286
      %s288 = ssub.s32 %s45, %s52
      %p289 = scmp.eq.s32.totalorder %s288, 0
      %s291 = sadd.s32 %s290, 1
      %s292 = scalar_select %p289, %s290, %s291
      %p295 = pneg %p289
      %p296 = scmp.eq.s32.totalorder %s37, 5
      %p297 = por %p295, %p296
      %p298 = scmp.ne.s32.totalorder %s290, %s293
      %p299 = scmp.eq.s32.totalorder %s37, 0
      %p300 = por %p298, %p299
      %p301 = scmp.ne.s32.totalorder %s290, %s293
      %p302 = scmp.eq.s32.totalorder %s42, 5
      %p303 = por %p301, %p302
      %p304 = scmp.ne.s32.totalorder %s293, %s294
      %p305 = scmp.eq.s32.totalorder %s42, 0
      %p306 = por %p304, %p305
      %p307 = scmp.ne.s32.totalorder %s293, %s294
      %p308 = scmp.eq.s32.totalorder %s43, 5
      %p309 = por %p307, %p308
      %p311 = scmp.ne.s32.totalorder %s294, %s310
      %p312 = scmp.eq.s32.totalorder %s43, 0
      %p313 = por %p311, %p312
      %s314 = ssub.s32 %s45, %s52
      %p315 = scmp.eq.s32.totalorder %s314, 0
      %s317 = sadd.s32 %s316, 1
      %s318 = scalar_select %p315, %s316, %s317
      %p321 = pneg %p315
      %p322 = scmp.eq.s32.totalorder %s37, 5
      %p323 = por %p321, %p322
      %p324 = scmp.ne.s32.totalorder %s316, %s319
      %p325 = scmp.eq.s32.totalorder %s37, 0
      %p326 = por %p324, %p325
      %p327 = scmp.ne.s32.totalorder %s316, %s319
      %p328 = scmp.eq.s32.totalorder %s42, 5
      %p329 = por %p327, %p328
      %p330 = scmp.ne.s32.totalorder %s319, %s320
      %p331 = scmp.eq.s32.totalorder %s42, 0
      %p332 = por %p330, %p331
      %p333 = scmp.ne.s32.totalorder %s319, %s320
      %p334 = scmp.eq.s32.totalorder %s43, 5
      %p335 = por %p333, %p334
      %p337 = scmp.ne.s32.totalorder %s320, %s336
      %p338 = scmp.eq.s32.totalorder %s43, 0
      %p339 = por %p337, %p338
      %s340 = ssub.s32 %s45, %s52
      %p341 = scmp.eq.s32.totalorder %s340, 0
      %s343 = sadd.s32 %s342, 1
      %s344 = scalar_select %p341, %s342, %s343
      %p347 = pneg %p341
      %p348 = scmp.eq.s32.totalorder %s37, 5
      %p349 = por %p347, %p348
      %p350 = scmp.ne.s32.totalorder %s342, %s345
      %p351 = scmp.eq.s32.totalorder %s37, 0
      %p352 = por %p350, %p351
      %p353 = scmp.ne.s32.totalorder %s342, %s345
      %p354 = scmp.eq.s32.totalorder %s42, 5
      %p355 = por %p353, %p354
      %p356 = scmp.ne.s32.totalorder %s345, %s346
      %p357 = scmp.eq.s32.totalorder %s42, 0
      %p358 = por %p356, %p357
      %p359 = scmp.ne.s32.totalorder %s345, %s346
      %p360 = scmp.eq.s32.totalorder %s43, 5
      %p361 = por %p359, %p360
      %p363 = scmp.ne.s32.totalorder %s346, %s362
      %p364 = scmp.eq.s32.totalorder %s43, 0
      %p365 = por %p363, %p364
      %s366 = ssub.s32 %s45, %s52
      %p367 = scmp.eq.s32.totalorder %s366, 0
      %s369 = sadd.s32 %s368, 1
      %s370 = scalar_select %p367, %s368, %s369
      %p373 = pneg %p367
      %p374 = scmp.eq.s32.totalorder %s37, 5
      %p375 = por %p373, %p374
      %p376 = scmp.ne.s32.totalorder %s368, %s371
      %p377 = scmp.eq.s32.totalorder %s37, 0
      %p378 = por %p376, %p377
      %p379 = scmp.ne.s32.totalorder %s368, %s371
      %p380 = scmp.eq.s32.totalorder %s42, 5
      %p381 = por %p379, %p380
      %p382 = scmp.ne.s32.totalorder %s371, %s372
      %p383 = scmp.eq.s32.totalorder %s42, 0
      %p384 = por %p382, %p383
      %p385 = scmp.ne.s32.totalorder %s371, %s372
      %p386 = scmp.eq.s32.totalorder %s43, 5
      %p387 = por %p385, %p386
      %p389 = scmp.ne.s32.totalorder %s372, %s388
      %p390 = scmp.eq.s32.totalorder %s43, 0
      %p391 = por %p389, %p390
      %s392 = ssub.s32 %s45, %s52
      %p393 = scmp.eq.s32.totalorder %s392, 0
      %s395 = sadd.s32 %s394, 1
      %s396 = scalar_select %p393, %s394, %s395
      %p399 = pneg %p393
      %p400 = scmp.eq.s32.totalorder %s37, 5
      %p401 = por %p399, %p400
      %p402 = scmp.ne.s32.totalorder %s394, %s397
      %p403 = scmp.eq.s32.totalorder %s37, 0
      %p404 = por %p402, %p403
      %p405 = scmp.ne.s32.totalorder %s394, %s397
      %p406 = scmp.eq.s32.totalorder %s42, 5
      %p407 = por %p405, %p406
      %p408 = scmp.ne.s32.totalorder %s397, %s398
      %p409 = scmp.eq.s32.totalorder %s42, 0
      %p410 = por %p408, %p409
      %p411 = scmp.ne.s32.totalorder %s397, %s398
      %p412 = scmp.eq.s32.totalorder %s43, 5
      %p413 = por %p411, %p412
      %p415 = scmp.ne.s32.totalorder %s398, %s414
      %p416 = scmp.eq.s32.totalorder %s43, 0
      %p417 = por %p415, %p416
      %s418 = ssub.s32 %s45, %s52
      %p419 = scmp.eq.s32.totalorder %s418, 0
      %s421 = sadd.s32 %s420, 1
      %s422 = scalar_select %p419, %s420, %s421
      %p425 = pneg %p419
      %p426 = scmp.eq.s32.totalorder %s37, 5
      %p427 = por %p425, %p426
      %p428 = scmp.ne.s32.totalorder %s420, %s423
      %p429 = scmp.eq.s32.totalorder %s37, 0
      %p430 = por %p428, %p429
      %p431 = scmp.ne.s32.totalorder %s420, %s423
      %p432 = scmp.eq.s32.totalorder %s42, 5
      %p433 = por %p431, %p432
      %p434 = scmp.ne.s32.totalorder %s423, %s424
      %p435 = scmp.eq.s32.totalorder %s42, 0
      %p436 = por %p434, %p435
      %p437 = scmp.ne.s32.totalorder %s423, %s424
      %p438 = scmp.eq.s32.totalorder %s43, 5
      %p439 = por %p437, %p438
      %p441 = scmp.ne.s32.totalorder %s424, %s440
      %p442 = scmp.eq.s32.totalorder %s43, 0
      %p443 = por %p441, %p442
      %s444 = ssub.s32 %s45, %s52
      %p445 = scmp.eq.s32.totalorder %s444, 0
      %s447 = sadd.s32 %s446, 1
      %s448 = scalar_select %p445, %s446, %s447
      %p451 = pneg %p445
      %p452 = scmp.eq.s32.totalorder %s37, 5
      %p453 = por %p451, %p452
      %p454 = scmp.ne.s32.totalorder %s446, %s449
      %p455 = scmp.eq.s32.totalorder %s37, 0
      %p456 = por %p454, %p455
      %p457 = scmp.ne.s32.totalorder %s446, %s449
      %p458 = scmp.eq.s32.totalorder %s42, 5
      %p459 = por %p457, %p458
      %p460 = scmp.ne.s32.totalorder %s449, %s450
      %p461 = scmp.eq.s32.totalorder %s42, 0
      %p462 = por %p460, %p461
      %p463 = scmp.ne.s32.totalorder %s449, %s450
      %p464 = scmp.eq.s32.totalorder %s43, 5
      %p465 = por %p463, %p464
      %p467 = scmp.ne.s32.totalorder %s450, %s466
      %p468 = scmp.eq.s32.totalorder %s43, 0
      %p469 = por %p467, %p468
      %s471 = sadd.s32 %s470, 1
      %p474 = scmp.eq.s32.totalorder %s37, 5
      %p475 = scmp.ne.s32.totalorder %s470, %s472
      %p476 = scmp.eq.s32.totalorder %s37, 0
      %p477 = por %p475, %p476
      %p478 = scmp.ne.s32.totalorder %s470, %s472
      %p479 = scmp.eq.s32.totalorder %s42, 5
      %p480 = por %p478, %p479
      %p481 = scmp.ne.s32.totalorder %s472, %s473
      %p482 = scmp.eq.s32.totalorder %s42, 0
      %p483 = por %p481, %p482
      %p484 = scmp.ne.s32.totalorder %s472, %s473
      %p485 = scmp.eq.s32.totalorder %s43, 5
      %p486 = por %p484, %p485
      %p488 = scmp.ne.s32.totalorder %s473, %s487
      %p489 = scmp.eq.s32.totalorder %s43, 0
      %p490 = por %p488, %p489
      %s492 = sadd.s32 %s491, 1
      %p495 = scmp.eq.s32.totalorder %s37, 5
      %p496 = scmp.ne.s32.totalorder %s491, %s493
      %p497 = scmp.eq.s32.totalorder %s37, 0
      %p498 = por %p496, %p497
      %p499 = scmp.ne.s32.totalorder %s491, %s493
      %p500 = scmp.eq.s32.totalorder %s42, 5
      %p501 = por %p499, %p500
      %p502 = scmp.ne.s32.totalorder %s493, %s494
      %p503 = scmp.eq.s32.totalorder %s42, 0
      %p504 = por %p502, %p503
      %p505 = scmp.ne.s32.totalorder %s493, %s494
      %p506 = scmp.eq.s32.totalorder %s43, 5
      %p507 = por %p505, %p506
      %p509 = scmp.ne.s32.totalorder %s494, %s508
      %p510 = scmp.eq.s32.totalorder %s43, 0
      %p511 = por %p509, %p510
      %s512 = ssub.s32 %s44, %s56
      %p513 = scmp.eq.s32.totalorder %s512, 0
      %s515 = sadd.s32 %s514, 1
      %s516 = scalar_select %p513, %s514, %s515
      %p519 = pneg %p513
      %p520 = scmp.eq.s32.totalorder %s37, 5
      %p521 = por %p519, %p520
      %p522 = scmp.ne.s32.totalorder %s514, %s517
      %p523 = scmp.eq.s32.totalorder %s37, 0
      %p524 = por %p522, %p523
      %p525 = scmp.ne.s32.totalorder %s514, %s517
      %p526 = scmp.eq.s32.totalorder %s42, 5
      %p527 = por %p525, %p526
      %p528 = scmp.ne.s32.totalorder %s517, %s518
      %p529 = scmp.eq.s32.totalorder %s42, 0
      %p530 = por %p528, %p529
      %p531 = scmp.ne.s32.totalorder %s517, %s518
      %p532 = scmp.eq.s32.totalorder %s43, 5
      %p533 = por %p531, %p532
      %p535 = scmp.ne.s32.totalorder %s518, %s534
      %p536 = scmp.eq.s32.totalorder %s43, 0
      %p537 = por %p535, %p536
      %p538 = scmp.le.s32.totalorder 1, %s37
      %p539 = scmp.lt.s32.totalorder %s37, 7
      %p540 = pnand %p538, %p539
      %p541 = pneg %p540
      // Predicated region
      $region9: #{tpu_custom_call.1} parent=5 // pred_check
        _
      $region10: #{tpu_custom_call.1} parent=5 // pred_check_branch
        %543 = sbr.rel (%p540) target = $region12
      $region11: #{tpu_custom_call.1} parent=5 // pred_region
        %s544 = ssub.s32 %s37, 1
        // Predicated region
        $region13: #{tpu_custom_call.1} parent=11 // pred_check
          %p545 = pneg %p70
        $region14: #{tpu_custom_call.1} parent=11 // pred_check_branch
          %547 = sbr.rel (%p545) target = $region16
        $region15: #{tpu_custom_call.1} parent=11 // pred_region
          %s549 = ssub.s32 16, 16
          %550 = vsyncadd [#allocation7], %s549
          %s552 = sshll.u32 %s0, 4
          %s553 = int_to_ptr.vmem [resolvable:$true] %s552
          %555 = dma.vmem_to_smem %s553, 16, [#allocation4], [#allocation7]
        $region16: #{tpu_custom_call.1} parent=11 // pred_fallthru
          _
        // Predicated region
        $region17: #{tpu_custom_call.1} parent=11 // pred_check
          %p556 = pneg %p483
        $region18: #{tpu_custom_call.1} parent=11 // pred_check_branch
          %558 = sbr.rel (%p556) target = $region20
        $region19: #{tpu_custom_call.1} parent=11 // pred_region
          _
        $region20: #{tpu_custom_call.1} parent=11 // pred_fallthru
          _
        // Predicated region
        $region21: #{tpu_custom_call.1} parent=11 // pred_check
          %p559 = pneg %p504
        $region22: #{tpu_custom_call.1} parent=11 // pred_check_branch
          %561 = sbr.rel (%p559) target = $region24
        $region23: #{tpu_custom_call.1} parent=11 // pred_region
          _
        $region24: #{tpu_custom_call.1} parent=11 // pred_fallthru
          _
      $region12: #{tpu_custom_call.1} parent=5 // pred_fallthru
        _
      %p562 = scmp.lt.s32.totalorder %s37, 6
      // Predicated region
      $region25: #{tpu_custom_call.1} parent=5 // pred_check
        %p563 = pneg %p562
      $region26: #{tpu_custom_call.1} parent=5 // pred_check_branch
        %565 = sbr.rel (%p563) target = $region28
      $region27: #{tpu_custom_call.1} parent=5 // pred_region
        // Predicated region
        $region29: #{tpu_custom_call.1} parent=27 // pred_check
          %p566 = pneg %p90
        $region30: #{tpu_custom_call.1} parent=27 // pred_check_branch
          %568 = sbr.rel (%p566) target = $region32
        $region31: #{tpu_custom_call.1} parent=27 // pred_region
          %p569 = scmp.lt.s32.totalorder %s44, 1
          %s570 = scalar_select %p569, %s44, 1
          %s571 = smul.addr %s570, 2
          %s572 = smul.addr %s571, 8
          %s573 = scalar_lea.vmem %s1, %s572
        $region32: #{tpu_custom_call.1} parent=27 // pred_fallthru
          _
        // Predicated region
        $region33: #{tpu_custom_call.1} parent=27 // pred_check
          %p574 = pneg %p118
        $region34: #{tpu_custom_call.1} parent=27 // pred_check_branch
          %576 = sbr.rel (%p574) target = $region36
        $region35: #{tpu_custom_call.1} parent=27 // pred_region
          %s577 = sand.u32 %s108, 1
          %s578 = scalar_lea.sflag [#allocation5], %s577
          %s579 = sand.u32 %s108, 1
          %s580 = smul.addr %s579, 32
          %s581 = scalar_lea.vmem [#allocation8], %s580
          %s583 = ssub.s32 512, 512
          %584 = vsyncadd %s578, %s583
          %s585 = smul.addr %s45, 4
          %s586 = smul.addr %s44, 12
          %s587 = sadd.s32 %s585, %s586
          %s588 = smul.addr %s587, 128
          %s589 = scalar_lea.hbm %s2, %s588
          %s590 = sshll.u32 %s581, 4
          %s591 = int_to_ptr.vmem [resolvable:$true] %s590
          %596 = dma.hbm_to_vmem [thread:$0]  %s589, 512, %s591, %s578, 128, 128, 8
        $region36: #{tpu_custom_call.1} parent=27 // pred_fallthru
          _
        // Predicated region
        $region37: #{tpu_custom_call.1} parent=27 // pred_check
          %p597 = pneg %p144
        $region38: #{tpu_custom_call.1} parent=27 // pred_check_branch
          %599 = sbr.rel (%p597) target = $region40
        $region39: #{tpu_custom_call.1} parent=27 // pred_region
          %p600 = scmp.lt.s32.totalorder %s44, 1
          %s601 = scalar_select %p600, %s44, 1
          %s602 = smul.addr %s601, 4
          %s603 = smul.addr %s602, 8
          %s604 = scalar_lea.vmem %s3, %s603
        $region40: #{tpu_custom_call.1} parent=27 // pred_fallthru
          _
        // Predicated region
        $region41: #{tpu_custom_call.1} parent=27 // pred_check
          %p605 = pneg %p170
        $region42: #{tpu_custom_call.1} parent=27 // pred_check_branch
          %607 = sbr.rel (%p605) target = $region44
        $region43: #{tpu_custom_call.1} parent=27 // pred_region
          %p608 = scmp.lt.s32.totalorder %s44, 1
          %s609 = scalar_select %p608, %s44, 1
          %s610 = scalar_lea.vmem %s4, %s609
        $region44: #{tpu_custom_call.1} parent=27 // pred_fallthru
          _
        // Predicated region
        $region45: #{tpu_custom_call.1} parent=27 // pred_check
          %p611 = pneg %p196
        $region46: #{tpu_custom_call.1} parent=27 // pred_check_branch
          %613 = sbr.rel (%p611) target = $region48
        $region47: #{tpu_custom_call.1} parent=27 // pred_region
          %p614 = scmp.lt.s32.totalorder %s44, 1
          %s615 = scalar_select %p614, %s44, 1
          %s616 = smul.addr %s615, 2
          %s617 = smul.addr %s616, 8
          %s618 = scalar_lea.vmem %s5, %s617
        $region48: #{tpu_custom_call.1} parent=27 // pred_fallthru
          _
        // Predicated region
        $region49: #{tpu_custom_call.1} parent=27 // pred_check
          %p619 = pneg %p222
        $region50: #{tpu_custom_call.1} parent=27 // pred_check_branch
          %621 = sbr.rel (%p619) target = $region52
        $region51: #{tpu_custom_call.1} parent=27 // pred_region
          %p622 = scmp.lt.s32.totalorder %s44, 1
          %s623 = scalar_select %p622, %s44, 1
          %s624 = scalar_lea.vmem %s6, %s623
        $region52: #{tpu_custom_call.1} parent=27 // pred_fallthru
          _
        // Predicated region
        $region53: #{tpu_custom_call.1} parent=27 // pred_check
          %p625 = pneg %p248
        $region54: #{tpu_custom_call.1} parent=27 // pred_check_branch
          %627 = sbr.rel (%p625) target = $region56
        $region55: #{tpu_custom_call.1} parent=27 // pred_region
          %p628 = scmp.lt.s32.totalorder %s44, 1
          %s629 = scalar_select %p628, %s44, 1
          %s630 = smul.addr %s629, 2
          %s631 = scalar_lea.vmem %s7, %s630
        $region56: #{tpu_custom_call.1} parent=27 // pred_fallthru
          _
        // Predicated region
        $region57: #{tpu_custom_call.1} parent=27 // pred_check
          %p632 = pneg %p274
        $region58: #{tpu_custom_call.1} parent=27 // pred_check_branch
          %634 = sbr.rel (%p632) target = $region60
        $region59: #{tpu_custom_call.1} parent=27 // pred_region
          %s635 = sand.u32 %s37, 1
          %s636 = scalar_lea.sflag [#allocation10], %s635
          %s637 = sand.u32 %s264, 1
          %s638 = smul.addr %s637, 128
          %s639 = scalar_lea.vmem [#allocation9], %s638
          %s641 = ssub.s32 2048, 2048
          %642 = vsyncadd %s636, %s641
          %s643 = smul.addr %s45, 32
          %s644 = smul.addr %s643, 64
          %s645 = scalar_lea.hbm %s8, %s644
          %s646 = sshll.u32 %s639, 4
          %s647 = int_to_ptr.vmem [resolvable:$true] %s646
          %652 = dma.hbm_to_vmem [thread:$0]  %s645, 2048, %s647, %s636, 128, 128, 8
        $region60: #{tpu_custom_call.1} parent=27 // pred_fallthru
          _
        // Predicated region
        $region61: #{tpu_custom_call.1} parent=27 // pred_check
          %p653 = pneg %p300
        $region62: #{tpu_custom_call.1} parent=27 // pred_check_branch
          %655 = sbr.rel (%p653) target = $region64
        $region63: #{tpu_custom_call.1} parent=27 // pred_region
          %p656 = scmp.lt.s32.totalorder %s45, 2
          %s657 = scalar_select %p656, %s45, 2
          %s658 = smul.addr %s657, 2
          %s659 = scalar_lea.vmem %s9, %s658
        $region64: #{tpu_custom_call.1} parent=27 // pred_fallthru
          _
        // Predicated region
        $region65: #{tpu_custom_call.1} parent=27 // pred_check
          %p660 = pneg %p326
        $region66: #{tpu_custom_call.1} parent=27 // pred_check_branch
          %662 = sbr.rel (%p660) target = $region68
        $region67: #{tpu_custom_call.1} parent=27 // pred_region
          %s663 = sand.u32 %s37, 1
          %s664 = scalar_lea.sflag [#allocation10], %s663
          %s665 = sand.u32 %s316, 1
          %s666 = smul.addr %s665, 128
          %s667 = scalar_lea.vmem [#allocation11], %s666
          %s669 = ssub.s32 2048, 2048
          %670 = vsyncadd %s664, %s669
          %s671 = smul.addr %s45, 32
          %s672 = smul.addr %s671, 64
          %s673 = scalar_lea.hbm %s10, %s672
          %s674 = sshll.u32 %s667, 4
          %s675 = int_to_ptr.vmem [resolvable:$true] %s674
          %680 = dma.hbm_to_vmem [thread:$0]  %s673, 2048, %s675, %s664, 64, 64, 4
        $region68: #{tpu_custom_call.1} parent=27 // pred_fallthru
          _
        // Predicated region
        $region69: #{tpu_custom_call.1} parent=27 // pred_check
          %p681 = pneg %p352
        $region70: #{tpu_custom_call.1} parent=27 // pred_check_branch
          %683 = sbr.rel (%p681) target = $region72
        $region71: #{tpu_custom_call.1} parent=27 // pred_region
          %p684 = scmp.lt.s32.totalorder %s45, 2
          %s685 = scalar_select %p684, %s45, 2
          %s686 = scalar_lea.vmem %s11, %s685
        $region72: #{tpu_custom_call.1} parent=27 // pred_fallthru
          _
        // Predicated region
        $region73: #{tpu_custom_call.1} parent=27 // pred_check
          %p687 = pneg %p378
        $region74: #{tpu_custom_call.1} parent=27 // pred_check_branch
          %689 = sbr.rel (%p687) target = $region76
        $region75: #{tpu_custom_call.1} parent=27 // pred_region
          %s690 = sand.u32 %s37, 1
          %s691 = scalar_lea.sflag [#allocation13], %s690
          %s692 = sand.u32 %s368, 1
          %s693 = smul.addr %s692, 128
          %s694 = scalar_lea.vmem [#allocation12], %s693
          %s696 = ssub.s32 2048, 2048
          %697 = vsyncadd %s691, %s696
          %s698 = smul.addr %s45, 32
          %s699 = smul.addr %s698, 64
          %s700 = scalar_lea.hbm %s12, %s699
          %s701 = sshll.u32 %s694, 4
          %s702 = int_to_ptr.vmem [resolvable:$true] %s701
          %707 = dma.hbm_to_vmem [thread:$0]  %s700, 2048, %s702, %s691, 128, 128, 8
        $region76: #{tpu_custom_call.1} parent=27 // pred_fallthru
          _
        // Predicated region
        $region77: #{tpu_custom_call.1} parent=27 // pred_check
          %p708 = pneg %p404
        $region78: #{tpu_custom_call.1} parent=27 // pred_check_branch
          %710 = sbr.rel (%p708) target = $region80
        $region79: #{tpu_custom_call.1} parent=27 // pred_region
          %p711 = scmp.lt.s32.totalorder %s45, 2
          %s712 = scalar_select %p711, %s45, 2
          %s713 = smul.addr %s712, 2
          %s714 = scalar_lea.vmem %s13, %s713
        $region80: #{tpu_custom_call.1} parent=27 // pred_fallthru
          _
        // Predicated region
        $region81: #{tpu_custom_call.1} parent=27 // pred_check
          %p715 = pneg %p430
        $region82: #{tpu_custom_call.1} parent=27 // pred_check_branch
          %717 = sbr.rel (%p715) target = $region84
        $region83: #{tpu_custom_call.1} parent=27 // pred_region
          %s718 = sand.u32 %s37, 1
          %s719 = scalar_lea.sflag [#allocation13], %s718
          %s720 = sand.u32 %s420, 1
          %s721 = smul.addr %s720, 128
          %s722 = scalar_lea.vmem [#allocation14], %s721
          %s724 = ssub.s32 2048, 2048
          %725 = vsyncadd %s719, %s724
          %s726 = smul.addr %s45, 32
          %s727 = smul.addr %s726, 64
          %s728 = scalar_lea.hbm %s14, %s727
          %s729 = sshll.u32 %s722, 4
          %s730 = int_to_ptr.vmem [resolvable:$true] %s729
          %735 = dma.hbm_to_vmem [thread:$0]  %s728, 2048, %s730, %s719, 64, 64, 4
        $region84: #{tpu_custom_call.1} parent=27 // pred_fallthru
          _
        // Predicated region
        $region85: #{tpu_custom_call.1} parent=27 // pred_check
          %p736 = pneg %p456
        $region86: #{tpu_custom_call.1} parent=27 // pred_check_branch
          %738 = sbr.rel (%p736) target = $region88
        $region87: #{tpu_custom_call.1} parent=27 // pred_region
          %p739 = scmp.lt.s32.totalorder %s45, 2
          %s740 = scalar_select %p739, %s45, 2
          %s741 = scalar_lea.vmem %s15, %s740
        $region88: #{tpu_custom_call.1} parent=27 // pred_fallthru
          _
      $region28: #{tpu_custom_call.1} parent=5 // pred_fallthru
        _
      %p742 = scmp.le.s32.totalorder 1, %s37
      %p743 = scmp.lt.s32.totalorder %s37, 7
      %p744 = pnand %p742, %p743
      %p745 = pneg %p744
      // Predicated region
      $region89: #{tpu_custom_call.1} parent=5 // pred_check
        _
      $region90: #{tpu_custom_call.1} parent=5 // pred_check_branch
        %747 = sbr.rel (%p744) target = $region92
      $region91: #{tpu_custom_call.1} parent=5 // pred_region
        %s748 = ssub.s32 %s37, 1
        // Predicated region
        $region93: #{tpu_custom_call.1} parent=91 // pred_check
          %p749 = pneg %p70
        $region94: #{tpu_custom_call.1} parent=91 // pred_check_branch
          %751 = sbr.rel (%p749) target = $region96
        $region95: #{tpu_custom_call.1} parent=91 // pred_region
          %752 = dma.done [#allocation7], 16
        $region96: #{tpu_custom_call.1} parent=91 // pred_fallthru
          _
        %s753 = sand.u32 %s111, 1
        %s754 = scalar_lea.sflag [#allocation5], %s753
        %s755 = sand.u32 %s111, 1
        %s756 = smul.addr %s755, 32
        %s757 = scalar_lea.vmem [#allocation8], %s756
        // Predicated region
        $region97: #{tpu_custom_call.1} parent=91 // pred_check
          %p758 = pneg %p124
        $region98: #{tpu_custom_call.1} parent=91 // pred_check_branch
          %760 = sbr.rel (%p758) target = $region100
        $region99: #{tpu_custom_call.1} parent=91 // pred_region
          %761 = dma.done %s754, 512
        $region100: #{tpu_custom_call.1} parent=91 // pred_fallthru
          _
        %s762 = sand.u32 %s42, 1
        %s763 = scalar_lea.sflag [#allocation10], %s762
        %s764 = sand.u32 %s267, 1
        %s765 = smul.addr %s764, 128
        %s766 = scalar_lea.vmem [#allocation9], %s765
        // Predicated region
        $region101: #{tpu_custom_call.1} parent=91 // pred_check
          %p767 = pneg %p280
        $region102: #{tpu_custom_call.1} parent=91 // pred_check_branch
          %769 = sbr.rel (%p767) target = $region104
        $region103: #{tpu_custom_call.1} parent=91 // pred_region
          %770 = dma.done %s763, 2048
        $region104: #{tpu_custom_call.1} parent=91 // pred_fallthru
          _
        %s771 = sand.u32 %s42, 1
        %s772 = scalar_lea.sflag [#allocation10], %s771
        %s773 = sand.u32 %s319, 1
        %s774 = smul.addr %s773, 128
        %s775 = scalar_lea.vmem [#allocation11], %s774
        // Predicated region
        $region105: #{tpu_custom_call.1} parent=91 // pred_check
          %p776 = pneg %p332
        $region106: #{tpu_custom_call.1} parent=91 // pred_check_branch
          %778 = sbr.rel (%p776) target = $region108
        $region107: #{tpu_custom_call.1} parent=91 // pred_region
          %779 = dma.done %s772, 2048
        $region108: #{tpu_custom_call.1} parent=91 // pred_fallthru
          _
        %s780 = sand.u32 %s42, 1
        %s781 = scalar_lea.sflag [#allocation13], %s780
        %s782 = sand.u32 %s371, 1
        %s783 = smul.addr %s782, 128
        %s784 = scalar_lea.vmem [#allocation12], %s783
        // Predicated region
        $region109: #{tpu_custom_call.1} parent=91 // pred_check
          %p785 = pneg %p384
        $region110: #{tpu_custom_call.1} parent=91 // pred_check_branch
          %787 = sbr.rel (%p785) target = $region112
        $region111: #{tpu_custom_call.1} parent=91 // pred_region
          %788 = dma.done %s781, 2048
        $region112: #{tpu_custom_call.1} parent=91 // pred_fallthru
          _
        %s789 = sand.u32 %s42, 1
        %s790 = scalar_lea.sflag [#allocation13], %s789
        %s791 = sand.u32 %s423, 1
        %s792 = smul.addr %s791, 128
        %s793 = scalar_lea.vmem [#allocation14], %s792
        // Predicated region
        $region113: #{tpu_custom_call.1} parent=91 // pred_check
          %p794 = pneg %p436
        $region114: #{tpu_custom_call.1} parent=91 // pred_check_branch
          %796 = sbr.rel (%p794) target = $region116
        $region115: #{tpu_custom_call.1} parent=91 // pred_region
          %797 = dma.done %s790, 2048
        $region116: #{tpu_custom_call.1} parent=91 // pred_fallthru
          _
        %798 = sfence
        %p799 = pneg %p70
        %p800 = pneg %p67
        %p801 = scmp.lt.s32.totalorder %s46, 1
        %s802 = scalar_select %p801, %s46, 1
        %s803 = smul.addr %s802, 2
        %s804 = smul.addr %s803, 8
        %s805 = scalar_lea.vmem %s1, %s804
        %p806 = pneg %p96
        %p807 = pneg %p93
        %s808 = sand.u32 %s111, 1
        %s809 = scalar_lea.sflag [#allocation5], %s808
        %s810 = sand.u32 %s111, 1
        %s811 = smul.addr %s810, 32
        %s812 = scalar_lea.vmem [#allocation8], %s811
        %p813 = pneg %p124
        %p814 = pneg %p121
        %p815 = scmp.lt.s32.totalorder %s46, 1
        %s816 = scalar_select %p815, %s46, 1
        %s817 = smul.addr %s816, 4
        %s818 = smul.addr %s817, 8
        %s819 = scalar_lea.vmem %s3, %s818
        %p820 = pneg %p150
        %p821 = pneg %p147
        %p822 = scmp.lt.s32.totalorder %s46, 1
        %s823 = scalar_select %p822, %s46, 1
        %s824 = scalar_lea.vmem %s4, %s823
        %p825 = pneg %p176
        %p826 = pneg %p173
        %p827 = scmp.lt.s32.totalorder %s46, 1
        %s828 = scalar_select %p827, %s46, 1
        %s829 = smul.addr %s828, 2
        %s830 = smul.addr %s829, 8
        %s831 = scalar_lea.vmem %s5, %s830
        %p832 = pneg %p202
        %p833 = pneg %p199
        %p834 = scmp.lt.s32.totalorder %s46, 1
        %s835 = scalar_select %p834, %s46, 1
        %s836 = scalar_lea.vmem %s6, %s835
        %p837 = pneg %p228
        %p838 = pneg %p225
        %p839 = scmp.lt.s32.totalorder %s46, 1
        %s840 = scalar_select %p839, %s46, 1
        %s841 = smul.addr %s840, 2
        %s842 = scalar_lea.vmem %s7, %s841
        %p843 = pneg %p254
        %p844 = pneg %p251
        %s845 = sand.u32 %s42, 1
        %s846 = scalar_lea.sflag [#allocation10], %s845
        %s847 = sand.u32 %s267, 1
        %s848 = smul.addr %s847, 128
        %s849 = scalar_lea.vmem [#allocation9], %s848
        %p850 = pneg %p280
        %p851 = pneg %p277
        %p852 = scmp.lt.s32.totalorder %s47, 2
        %s853 = scalar_select %p852, %s47, 2
        %s854 = smul.addr %s853, 2
        %s855 = scalar_lea.vmem %s9, %s854
        %p856 = pneg %p306
        %p857 = pneg %p303
        %s858 = sand.u32 %s42, 1
        %s859 = scalar_lea.sflag [#allocation10], %s858
        %s860 = sand.u32 %s319, 1
        %s861 = smul.addr %s860, 128
        %s862 = scalar_lea.vmem [#allocation11], %s861
        %p863 = pneg %p332
        %p864 = pneg %p329
        %p865 = scmp.lt.s32.totalorder %s47, 2
        %s866 = scalar_select %p865, %s47, 2
        %s867 = scalar_lea.vmem %s11, %s866
        %p868 = pneg %p358
        %p869 = pneg %p355
        %s870 = sand.u32 %s42, 1
        %s871 = scalar_lea.sflag [#allocation13], %s870
        %s872 = sand.u32 %s371, 1
        %s873 = smul.addr %s872, 128
        %s874 = scalar_lea.vmem [#allocation12], %s873
        %p875 = pneg %p384
        %p876 = pneg %p381
        %p877 = scmp.lt.s32.totalorder %s47, 2
        %s878 = scalar_select %p877, %s47, 2
        %s879 = smul.addr %s878, 2
        %s880 = scalar_lea.vmem %s13, %s879
        %p881 = pneg %p410
        %p882 = pneg %p407
        %s883 = sand.u32 %s42, 1
        %s884 = scalar_lea.sflag [#allocation13], %s883
        %s885 = sand.u32 %s423, 1
        %s886 = smul.addr %s885, 128
        %s887 = scalar_lea.vmem [#allocation14], %s886
        %p888 = pneg %p436
        %p889 = pneg %p433
        %p890 = scmp.lt.s32.totalorder %s47, 2
        %s891 = scalar_select %p890, %s47, 2
        %s892 = scalar_lea.vmem %s15, %s891
        %p893 = pneg %p462
        %p894 = pneg %p459
        %p895 = pneg %p483
        %p896 = pneg %p480
        %p897 = pneg %p504
        %p898 = pneg %p501
        %p899 = pneg %p530
        %p900 = pneg %p527
        %s901 = sand.u32 %s517, 1
        %s902 = scalar_lea.sflag [#allocation6], %s901
        %s903 = sand.u32 %s517, 1
        %s904 = smul.addr %s903, 2
        %s905 = scalar_lea.vmem [#allocation15], %s904
        %p906 = scmp.lt.s32.totalorder %s46, 1
        %s907 = scalar_select %p906, %s46, 1
        %s908 = smul.addr %s907, 2
        %s909 = smul.addr %s908, 8
        %s910 = scalar_lea.vmem %s1, %s909
        %p911 = scmp.lt.s32.totalorder %s46, 1
        %s912 = scalar_select %p911, %s46, 1
        %s913 = smul.addr %s912, 4
        %s914 = smul.addr %s913, 8
        %s915 = scalar_lea.vmem %s3, %s914
        %p916 = scmp.lt.s32.totalorder %s46, 1
        %s917 = scalar_select %p916, %s46, 1
        %s918 = scalar_lea.vmem %s4, %s917
        %p919 = scmp.lt.s32.totalorder %s46, 1
        %s920 = scalar_select %p919, %s46, 1
        %s921 = smul.addr %s920, 2
        %s922 = smul.addr %s921, 8
        %s923 = scalar_lea.vmem %s5, %s922
        %p924 = scmp.lt.s32.totalorder %s46, 1
        %s925 = scalar_select %p924, %s46, 1
        %s926 = scalar_lea.vmem %s6, %s925
        %p927 = scmp.lt.s32.totalorder %s46, 1
        %s928 = scalar_select %p927, %s46, 1
        %s929 = smul.addr %s928, 2
        %s930 = scalar_lea.vmem %s7, %s929
        %p931 = scmp.lt.s32.totalorder %s47, 2
        %s932 = scalar_select %p931, %s47, 2
        %s933 = smul.addr %s932, 2
        %s934 = scalar_lea.vmem %s9, %s933
        %p935 = scmp.lt.s32.totalorder %s47, 2
        %s936 = scalar_select %p935, %s47, 2
        %s937 = scalar_lea.vmem %s11, %s936
        %p938 = scmp.lt.s32.totalorder %s47, 2
        %s939 = scalar_select %p938, %s47, 2
        %s940 = smul.addr %s939, 2
        %s941 = scalar_lea.vmem %s13, %s940
        %p942 = scmp.lt.s32.totalorder %s47, 2
        %s943 = scalar_select %p942, %s47, 2
        %s944 = scalar_lea.vmem %s15, %s943
        %p946 = scmp.eq.s32.totalorder %s47, 0
        // Predicated region
        $region117: #{tpu_custom_call.1} parent=91 // pred_check
          %p947 = pneg %p946
        $region118: #{tpu_custom_call.1} parent=91 // pred_check_branch
          %949 = sbr.rel (%p947) target = $region120
        $region119: #{tpu_custom_call.1} parent=91 // pred_region
          %v950 = vld [vmem:[%s910] sm:$0xff]
          %v951 = vld [vmem:[%s910 + $0x8] sm:$0xff]
          %952 = vst [vmem:[#allocation2] sm:$0xff] %v950
          %953 = vst [vmem:[#allocation2 + $0x8] sm:$0xff] %v951
          %954 = vst [vmem:[#allocation3] sm:$0x3] 0.0
        $region120: #{tpu_custom_call.1} parent=91 // pred_fallthru
          _
        %v955 = vld [vmem:[%s915] sm:$0xff]
        %v956 = vld [vmem:[%s915 + $0x8] sm:$0xff]
        %v957 = vld [vmem:[%s915 + $0x10] sm:$0xff]
        %v958 = vld [vmem:[%s915 + $0x18] sm:$0xff]
        %v959 = vlaneseq
        %v960 = vand.u32 %v959, 127
        %961 = vset.pattern.permute.xlu0 0
        %962 = vperm.xlu0 %961, %v955
        %v963 = vpop.permute.xlu0 %962
        %964 = vset.pattern.permute.xlu0 0
        %965 = vperm.xlu0 %964, %v956
        %v966 = vpop.permute.xlu0 %965
        %967 = vset.pattern.permute.xlu0 0
        %968 = vperm.xlu0 %967, %v957
        %v969 = vpop.permute.xlu0 %968
        %970 = vset.pattern.permute.xlu0 0
        %971 = vperm.xlu0 %970, %v958
        %v972 = vpop.permute.xlu0 %971
        %vm973 = vcmp.eq.s32.totalorder %v963, %v960
        %vm974 = vcmp.eq.s32.totalorder %v966, %v960
        %vm975 = vcmp.eq.s32.totalorder %v969, %v960
        %vm976 = vcmp.eq.s32.totalorder %v972, %v960
        %v977 = vsel %vm973, 1, 0
        %v978 = vsel %vm974, 1, 0
        %v979 = vsel %vm975, 1, 0
        %v980 = vsel %vm976, 1, 0
        %v981 = vcvt.s32.f32 %v977
        %v982 = vcvt.s32.f32 %v978
        %v983 = vcvt.s32.f32 %v979
        %v984 = vcvt.s32.f32 %v980
        %v985 = vpack.c.bf16 %v982, %v981
        %v986 = vpack.c.bf16 %v984, %v983
        %v987 = vld [vmem:[%s918] sm:$0x1]
        %v988 = vlaneseq
        %v989 = vshrl.u32 %v988, 7
        %v990 = vadd.s32 %v989, 8
        %v991 = vlaneseq
        %v992 = vshrl.u32 %v991, 7
        %v993 = vsub.s32 0, %v992
        %v994 = vrot.slane %v987, %v993
        %vm995 = vcmp.eq.s32.totalorder %v994, %v989
        %vm996 = vcmp.eq.s32.totalorder %v994, %v990
        %v997 = vsel %vm995, 1, 0
        %v998 = vsel %vm996, 1, 0
        %v999 = vcvt.s32.f32 %v997
        %v1000 = vcvt.s32.f32 %v998
        %v1001 = vpack.c.bf16 %v1000, %v999
        %v1002 = vld [vmem:[%s923] sm:$0xff]
        %v1003 = vld [vmem:[%s923 + $0x8] sm:$0xff]
        %1004 = vset.pattern.permute.xlu0 0
        %1005 = vperm.xlu0 %1004, %v1002
        %v1006 = vpop.permute.xlu0 %1005
        %1007 = vset.pattern.permute.xlu0 0
        %1008 = vperm.xlu0 %1007, %v1003
        %v1009 = vpop.permute.xlu0 %1008
        %vm1010 = vcmp.eq.s32.totalorder %v1006, %v960
        %vm1011 = vcmp.eq.s32.totalorder %v1009, %v960
        %v1012 = vsel %vm1010, 1, 0
        %v1013 = vsel %vm1011, 1, 0
        %v1014 = vcvt.s32.f32 %v1012
        %v1015 = vcvt.s32.f32 %v1013
        %v1016 = vpack.c.bf16 %v1015, %v1014
        %v1017 = vld [vmem:[%s926] sm:$0x1]
        %v1018 = vlaneseq
        %v1019 = vshrl.u32 %v1018, 7
        %v1020 = vsub.s32 0, %v1019
        %v1021 = vrot.slane %v1017, %v1020
        %vm1022 = vcmp.eq.s32.totalorder %v1021, %v989
        %v1023 = vsel %vm1022, 1, 0
        %v1024 = vcvt.s32.f32 %v1023
        %v1025 = vpack.c.bf16 %v1024, %v1024
        %v1026 = vld [vmem:[#allocation2] sm:$0xff]
        %v1027 = vld [vmem:[#allocation2 + $0x8] sm:$0xff]
        %v1028 = vld [vmem:[#allocation3] sm:$0x3]
        %v1029 = vpack.c.bf16 %v1028, %v1028
        %vm1030 = vcmask 15360
        %v1032 = vsel %vm1030, %v1016, 0
        %vm1034 = vcmask 1040384
        %v1036 = vsel %vm1034, %v1029, 0
        %1038 = vmatprep.subr.bf16.mxu0 0
        %1039 = vmatpush1.bf16.msra.mxu0 %v1036
        %1040 = vmatprep.subr.bf16.mxu0 0
        %1041 = vmatpush1.bf16.msra.mxu0 0
        %1042 = vmatprep.subr.bf16.mxu0 0
        %1043 = vmatpush1.bf16.msra.mxu0 0
        %1044 = vmatprep.subr.bf16.mxu0 0
        %1045 = vmatpush1.bf16.msra.mxu0 0
        %1046 = vmatprep.subr.bf16.mxu0 0
        %1047 = vmatpush1.bf16.msra.mxu0 0
        %1048 = vmatprep.subr.bf16.mxu0 0
        %1049 = vmatpush1.bf16.msra.mxu0 0
        %1050 = vmatprep.subr.bf16.mxu0 0
        %1051 = vmatpush1.bf16.msra.mxu0 0
        %1052 = vmatprep.subr.bf16.mxu0 0
        %1053 = vmatpush1.bf16.msra.mxu0 0
        %1054 = vmatprep.subr.bf16.mxu0 0
        %1055 = vmatpush1.bf16.msra.mxu0 0
        %1056 = vmatprep.subr.bf16.mxu0 0
        %1057 = vmatpush1.bf16.msra.mxu0 0
        %1058 = vmatprep.subr.bf16.mxu0 0
        %1059 = vmatpush1.bf16.msra.mxu0 0
        %1060 = vmatprep.subr.bf16.mxu0 0
        %1061 = vmatpush1.bf16.msra.mxu0 0
        %1062 = vmatprep.subr.bf16.mxu0 0
        %1063 = vmatpush1.bf16.msra.mxu0 0
        %1064 = vmatprep.subr.bf16.mxu0 0
        %1065 = vmatpush1.bf16.msra.mxu0 0
        %1066 = vmatprep.subr.bf16.mxu0 0
        %1067 = vmatpush1.bf16.msra.mxu0 0
        %1068 = vmatprep.subr.bf16.mxu0 0
        %1069 = vmatpush1.bf16.msra.mxu0 0
        %1070 = vmatprep.mubr.bf16.mxu0 0
        %1071 = vmatmul.mubr.bf16.gmra.mrb[0].mxu0 %v1032
        %v1072 = vpop.f32.mrb[0].mxu0
        %v1073 = vadd.f32 0.0, %v1072
        %v1074 = vpop.f32.mrb[0].mxu0
        %v1075 = vpop.f32.mrb[0].mxu0
        %v1076 = vadd.f32 0.0, %v1075
        %v1077 = vpop.f32.mrb[0].mxu0
        %1078 = vdwg.mxu0
        %v1079 = vadd.f32 %v1026, %v1073
        %v1080 = vadd.f32 %v1027, %v1076
        %v1081 = vpack.c.bf16 %v1080, %v1079
        %s1082 = sld [smem:[#allocation4 + %s47]]
        %v1083 = vld [vmem:[%s757] sm:$0xff]
        %v1084 = vld [vmem:[%s757 + $0x8] sm:$0xff]
        %v1085 = vld [vmem:[%s757 + $0x10] sm:$0xff]
        %v1086 = vld [vmem:[%s757 + $0x18] sm:$0xff]
        %vm1087 = vcmask 130048
        %v1089 = vsel %vm1087, %v985, 0
        %v1092 = vsel %vm1087, %v986, 0
        %1094 = vmatprep.subr.bf16.mxu0 0
        %1095 = vmatpush1.bf16.msra.mxu0 %v1081
        %1096 = vmatprep.subr.bf16.mxu0 0
        %1097 = vmatpush1.bf16.msra.mxu0 0
        %1098 = vmatprep.subr.bf16.mxu0 0
        %1099 = vmatpush1.bf16.msra.mxu0 0
        %1100 = vmatprep.subr.bf16.mxu0 0
        %1101 = vmatpush1.bf16.msra.mxu0 0
        %1102 = vmatprep.subr.bf16.mxu0 0
        %1103 = vmatpush1.bf16.msra.mxu0 0
        %1104 = vmatprep.subr.bf16.mxu0 0
        %1105 = vmatpush1.bf16.msra.mxu0 0
        %1106 = vmatprep.subr.bf16.mxu0 0
        %1107 = vmatpush1.bf16.msra.mxu0 0
        %1108 = vmatprep.subr.bf16.mxu0 0
        %1109 = vmatpush1.bf16.msra.mxu0 0
        %1110 = vmatprep.subr.bf16.mxu0 0
        %1111 = vmatpush1.bf16.msra.mxu0 0
        %1112 = vmatprep.subr.bf16.mxu0 0
        %1113 = vmatpush1.bf16.msra.mxu0 0
        %1114 = vmatprep.subr.bf16.mxu0 0
        %1115 = vmatpush1.bf16.msra.mxu0 0
        %1116 = vmatprep.subr.bf16.mxu0 0
        %1117 = vmatpush1.bf16.msra.mxu0 0
        %1118 = vmatprep.subr.bf16.mxu0 0
        %1119 = vmatpush1.bf16.msra.mxu0 0
        %1120 = vmatprep.subr.bf16.mxu0 0
        %1121 = vmatpush1.bf16.msra.mxu0 0
        %1122 = vmatprep.subr.bf16.mxu0 0
        %1123 = vmatpush1.bf16.msra.mxu0 0
        %1124 = vmatprep.subr.bf16.mxu0 0
        %1125 = vmatpush1.bf16.msra.mxu0 0
        %1126 = vmatprep.mubr.bf16.mxu0 0
        %1127 = vmatmul.mubr.bf16.gmra.mrb[0].mxu0 %v1089
        %v1128 = vpop.f32.mrb[0].mxu0
        %v1129 = vadd.f32 %v1083, %v1128
        %v1130 = vpop.f32.mrb[0].mxu0
        %v1131 = vpop.f32.mrb[0].mxu0
        %v1132 = vadd.f32 %v1084, %v1131
        %v1133 = vpop.f32.mrb[0].mxu0
        %1134 = vmatprep.mubr.bf16.mxu0 0
        %1135 = vmatmul.mubr.bf16.gmra.mrb[0].mxu0 %v1092
        %v1136 = vpop.f32.mrb[0].mxu0
        %v1137 = vadd.f32 %v1085, %v1136
        %v1138 = vpop.f32.mrb[0].mxu0
        %v1139 = vpop.f32.mrb[0].mxu0
        %v1140 = vadd.f32 %v1086, %v1139
        %v1141 = vpop.f32.mrb[0].mxu0
        %1142 = vdwg.mxu0
        %v1143 = vmax.f32 %v1129, 0.0
        %v1144 = vmax.f32 %v1132, 0.0
        %v1145 = vmax.f32 %v1137, 0.0
        %v1146 = vmax.f32 %v1140, 0.0
        %s1147 = sadd.f32 %s1082, 1.0
        %v1148 = vstv %s1147
        %v1149 = vmul.f32 %v1148, %v1079
        %v1150 = vmul.f32 %v1148, %v1080
        %v1151 = vpack.c.bf16 %v1144, %v1143
        %v1152 = vpack.c.bf16 %v1146, %v1145
        %vm1153 = vcmask 261120
        %v1155 = vsel %vm1153, %v1001, 0
        %1157 = vmatprep.subr.bf16.mxu0 0
        %1158 = vmatpush1.bf16.msra.mxu0 %v1151
        %1159 = vmatprep.subr.bf16.mxu0 0
        %1160 = vmatpush1.bf16.msra.mxu0 %v1152
        %1161 = vmatprep.subr.bf16.mxu0 0
        %1162 = vmatpush1.bf16.msra.mxu0 0
        %1163 = vmatprep.subr.bf16.mxu0 0
        %1164 = vmatpush1.bf16.msra.mxu0 0
        %1165 = vmatprep.subr.bf16.mxu0 0
        %1166 = vmatpush1.bf16.msra.mxu0 0
        %1167 = vmatprep.subr.bf16.mxu0 0
        %1168 = vmatpush1.bf16.msra.mxu0 0
        %1169 = vmatprep.subr.bf16.mxu0 0
        %1170 = vmatpush1.bf16.msra.mxu0 0
        %1171 = vmatprep.subr.bf16.mxu0 0
        %1172 = vmatpush1.bf16.msra.mxu0 0
        %1173 = vmatprep.subr.bf16.mxu0 0
        %1174 = vmatpush1.bf16.msra.mxu0 0
        %1175 = vmatprep.subr.bf16.mxu0 0
        %1176 = vmatpush1.bf16.msra.mxu0 0
        %1177 = vmatprep.subr.bf16.mxu0 0
        %1178 = vmatpush1.bf16.msra.mxu0 0
        %1179 = vmatprep.subr.bf16.mxu0 0
        %1180 = vmatpush1.bf16.msra.mxu0 0
        %1181 = vmatprep.subr.bf16.mxu0 0
        %1182 = vmatpush1.bf16.msra.mxu0 0
        %1183 = vmatprep.subr.bf16.mxu0 0
        %1184 = vmatpush1.bf16.msra.mxu0 0
        %1185 = vmatprep.subr.bf16.mxu0 0
        %1186 = vmatpush1.bf16.msra.mxu0 0
        %1187 = vmatprep.subr.bf16.mxu0 0
        %1188 = vmatpush1.bf16.msra.mxu0 0
        %1189 = vmatprep.mubr.bf16.mxu0 0
        %1190 = vmatmul.mubr.bf16.gmra.mrb[0].mxu0 %v1155
        %v1191 = vpop.f32.mrb[0].mxu0
        %v1192 = vadd.f32 0.0, %v1191
        %v1193 = vpop.f32.mrb[0].mxu0
        %v1194 = vpop.f32.mrb[0].mxu0
        %v1195 = vadd.f32 0.0, %v1194
        %v1196 = vpop.f32.mrb[0].mxu0
        %1197 = vdwg.mxu0
        %v1198 = vadd.f32 %v1149, %v1192
        %v1199 = vadd.f32 %v1150, %v1195
        %v1200 = vpack.c.bf16 %v1199, %v1198
        %v1201 = vld [vmem:[%s766] sm:$0xff]
        %v1202 = vld [vmem:[%s766 + $0x8] sm:$0xff]
        %v1203 = vld [vmem:[%s766 + $0x10] sm:$0xff]
        %v1204 = vld [vmem:[%s766 + $0x18] sm:$0xff]
        %v1205 = vld [vmem:[%s766 + $0x20] sm:$0xff]
        %v1206 = vld [vmem:[%s766 + $0x28] sm:$0xff]
        %v1207 = vld [vmem:[%s766 + $0x30] sm:$0xff]
        %v1208 = vld [vmem:[%s766 + $0x38] sm:$0xff]
        %v1209 = vld [vmem:[%s766 + $0x40] sm:$0xff]
        %v1210 = vld [vmem:[%s766 + $0x48] sm:$0xff]
        %v1211 = vld [vmem:[%s766 + $0x50] sm:$0xff]
        %v1212 = vld [vmem:[%s766 + $0x58] sm:$0xff]
        %v1213 = vld [vmem:[%s766 + $0x60] sm:$0xff]
        %v1214 = vld [vmem:[%s766 + $0x68] sm:$0xff]
        %v1215 = vld [vmem:[%s766 + $0x70] sm:$0xff]
        %v1216 = vld [vmem:[%s766 + $0x78] sm:$0xff]
        %v1217 = vld [vmem:[%s934] sm:$0x3]
        %v1219 = vlaneseq
        %v1220 = vshrl.u32 %v1219, 7
        %v1221 = vsub.s32 0, %v1220
        %v1222 = vrot.slane %v1217, %v1221
        %v1223 = vlaneseq
        %v1224 = vshrl.u32 %v1223, 7
        %v1225 = vsub.s32 1, %v1224
        %v1226 = vrot.slane %v1217, %v1225
        %v1245 = vunpack.c.l.b16 %v1201
        %v1246 = vunpack.c.h.b16 %v1201
        %v1247 = vunpack.c.l.b16 %v1202
        %v1248 = vunpack.c.h.b16 %v1202
        %v1249 = vunpack.c.l.b16 %v1203
        %v1250 = vunpack.c.h.b16 %v1203
        %v1251 = vunpack.c.l.b16 %v1204
        %v1252 = vunpack.c.h.b16 %v1204
        %v1253 = vunpack.c.l.b16 %v1205
        %v1254 = vunpack.c.h.b16 %v1205
        %v1255 = vunpack.c.l.b16 %v1206
        %v1256 = vunpack.c.h.b16 %v1206
        %v1257 = vunpack.c.l.b16 %v1207
        %v1258 = vunpack.c.h.b16 %v1207
        %v1259 = vunpack.c.l.b16 %v1208
        %v1260 = vunpack.c.h.b16 %v1208
        %v1261 = vunpack.c.l.b16 %v1209
        %v1262 = vunpack.c.h.b16 %v1209
        %v1263 = vunpack.c.l.b16 %v1210
        %v1264 = vunpack.c.h.b16 %v1210
        %v1265 = vunpack.c.l.b16 %v1211
        %v1266 = vunpack.c.h.b16 %v1211
        %v1267 = vunpack.c.l.b16 %v1212
        %v1268 = vunpack.c.h.b16 %v1212
        %v1269 = vunpack.c.l.b16 %v1213
        %v1270 = vunpack.c.h.b16 %v1213
        %v1271 = vunpack.c.l.b16 %v1214
        %v1272 = vunpack.c.h.b16 %v1214
        %v1273 = vunpack.c.l.b16 %v1215
        %v1274 = vunpack.c.h.b16 %v1215
        %v1275 = vunpack.c.l.b16 %v1216
        %v1276 = vunpack.c.h.b16 %v1216
        %v1277 = vpack.c.b16 %v1247, %v1245
        %v1278 = vpack.c.b16 %v1248, %v1246
        %v1279 = vpack.c.b16 %v1251, %v1249
        %v1280 = vpack.c.b16 %v1252, %v1250
        %v1281 = vpack.c.b16 %v1255, %v1253
        %v1282 = vpack.c.b16 %v1256, %v1254
        %v1283 = vpack.c.b16 %v1259, %v1257
        %v1284 = vpack.c.b16 %v1260, %v1258
        %v1285 = vpack.c.b16 %v1263, %v1261
        %v1286 = vpack.c.b16 %v1264, %v1262
        %v1287 = vpack.c.b16 %v1267, %v1265
        %v1288 = vpack.c.b16 %v1268, %v1266
        %v1289 = vpack.c.b16 %v1271, %v1269
        %v1290 = vpack.c.b16 %v1272, %v1270
        %v1291 = vpack.c.b16 %v1275, %v1273
        %v1292 = vpack.c.b16 %v1276, %v1274
        %1309 = vmatprep.subr.bf16.mxu0 %v1278
        %1310 = vmatpush1.bf16.msra.mxu0 %v1277
        %1311 = vmatprep.subr.bf16.mxu0 %v1280
        %1312 = vmatpush1.bf16.msra.mxu0 %v1279
        %1313 = vmatprep.subr.bf16.mxu0 %v1282
        %1314 = vmatpush1.bf16.msra.mxu0 %v1281
        %1315 = vmatprep.subr.bf16.mxu0 %v1284
        %1316 = vmatpush1.bf16.msra.mxu0 %v1283
        %1317 = vmatprep.subr.bf16.mxu0 %v1286
        %1318 = vmatpush1.bf16.msra.mxu0 %v1285
        %1319 = vmatprep.subr.bf16.mxu0 %v1288
        %1320 = vmatpush1.bf16.msra.mxu0 %v1287
        %1321 = vmatprep.subr.bf16.mxu0 %v1290
        %1322 = vmatpush1.bf16.msra.mxu0 %v1289
        %1323 = vmatprep.subr.bf16.mxu0 %v1292
        %1324 = vmatpush1.bf16.msra.mxu0 %v1291
        %1325 = vmatprep.subr.bf16.mxu0 0
        %1326 = vmatpush1.bf16.msra.mxu0 0
        %1327 = vmatprep.subr.bf16.mxu0 0
        %1328 = vmatpush1.bf16.msra.mxu0 0
        %1329 = vmatprep.subr.bf16.mxu0 0
        %1330 = vmatpush1.bf16.msra.mxu0 0
        %1331 = vmatprep.subr.bf16.mxu0 0
        %1332 = vmatpush1.bf16.msra.mxu0 0
        %1333 = vmatprep.subr.bf16.mxu0 0
        %1334 = vmatpush1.bf16.msra.mxu0 0
        %1335 = vmatprep.subr.bf16.mxu0 0
        %1336 = vmatpush1.bf16.msra.mxu0 0
        %1337 = vmatprep.subr.bf16.mxu0 0
        %1338 = vmatpush1.bf16.msra.mxu0 0
        %1339 = vmatprep.subr.bf16.mxu0 0
        %1340 = vmatpush1.bf16.msra.mxu0 0
        %1341 = vmatprep.mubr.bf16.mxu0 0
        %1342 = vmatmul.mubr.bf16.gmra.mrb[0].mxu0 %v1200
        %v1343 = vpop.f32.mrb[0].mxu0
        %v1344 = vadd.f32 %v1222, %v1343
        %v1345 = vpop.f32.mrb[0].mxu0
        %v1346 = vadd.f32 %v1226, %v1345
        %v1347 = vpop.f32.mrb[0].mxu0
        %v1348 = vadd.f32 %v1222, %v1347
        %v1349 = vpop.f32.mrb[0].mxu0
        %v1350 = vadd.f32 %v1226, %v1349
        %1351 = vdwg.mxu0
        %v1352 = vmax.f32 %v1344, 0.0
        %v1353 = vmax.f32 %v1346, 0.0
        %v1354 = vmax.f32 %v1348, 0.0
        %v1355 = vmax.f32 %v1350, 0.0
        %v1356 = vpack.c.bf16 %v1354, %v1352
        %v1357 = vpack.c.bf16 %v1355, %v1353
        %v1358 = vld [vmem:[%s775] sm:$0xf]
        %v1359 = vld [vmem:[%s775 + $0x4] sm:$0xf]
        %v1360 = vld [vmem:[%s775 + $0x8] sm:$0xf]
        %v1361 = vld [vmem:[%s775 + $0xc] sm:$0xf]
        %v1362 = vld [vmem:[%s775 + $0x10] sm:$0xf]
        %v1363 = vld [vmem:[%s775 + $0x14] sm:$0xf]
        %v1364 = vld [vmem:[%s775 + $0x18] sm:$0xf]
        %v1365 = vld [vmem:[%s775 + $0x1c] sm:$0xf]
        %v1366 = vld [vmem:[%s775 + $0x20] sm:$0xf]
        %v1367 = vld [vmem:[%s775 + $0x24] sm:$0xf]
        %v1368 = vld [vmem:[%s775 + $0x28] sm:$0xf]
        %v1369 = vld [vmem:[%s775 + $0x2c] sm:$0xf]
        %v1370 = vld [vmem:[%s775 + $0x30] sm:$0xf]
        %v1371 = vld [vmem:[%s775 + $0x34] sm:$0xf]
        %v1372 = vld [vmem:[%s775 + $0x38] sm:$0xf]
        %v1373 = vld [vmem:[%s775 + $0x3c] sm:$0xf]
        %v1374 = vld [vmem:[%s775 + $0x40] sm:$0xf]
        %v1375 = vld [vmem:[%s775 + $0x44] sm:$0xf]
        %v1376 = vld [vmem:[%s775 + $0x48] sm:$0xf]
        %v1377 = vld [vmem:[%s775 + $0x4c] sm:$0xf]
        %v1378 = vld [vmem:[%s775 + $0x50] sm:$0xf]
        %v1379 = vld [vmem:[%s775 + $0x54] sm:$0xf]
        %v1380 = vld [vmem:[%s775 + $0x58] sm:$0xf]
        %v1381 = vld [vmem:[%s775 + $0x5c] sm:$0xf]
        %v1382 = vld [vmem:[%s775 + $0x60] sm:$0xf]
        %v1383 = vld [vmem:[%s775 + $0x64] sm:$0xf]
        %v1384 = vld [vmem:[%s775 + $0x68] sm:$0xf]
        %v1385 = vld [vmem:[%s775 + $0x6c] sm:$0xf]
        %v1386 = vld [vmem:[%s775 + $0x70] sm:$0xf]
        %v1387 = vld [vmem:[%s775 + $0x74] sm:$0xf]
        %v1388 = vld [vmem:[%s775 + $0x78] sm:$0xf]
        %v1389 = vld [vmem:[%s775 + $0x7c] sm:$0xf]
        %v1390 = vld [vmem:[%s937] sm:$0x1]
        %v1392 = vlaneseq
        %v1393 = vshrl.u32 %v1392, 7
        %v1394 = vsub.s32 0, %v1393
        %v1395 = vrot.slane %v1390, %v1394
        %v1429 = vunpack.c.l.b16 %v1358
        %v1430 = vunpack.c.l.b16 %v1359
        %v1431 = vunpack.c.l.b16 %v1360
        %v1432 = vunpack.c.l.b16 %v1361
        %v1433 = vunpack.c.l.b16 %v1362
        %v1434 = vunpack.c.l.b16 %v1363
        %v1435 = vunpack.c.l.b16 %v1364
        %v1436 = vunpack.c.l.b16 %v1365
        %v1437 = vunpack.c.l.b16 %v1366
        %v1438 = vunpack.c.l.b16 %v1367
        %v1439 = vunpack.c.l.b16 %v1368
        %v1440 = vunpack.c.l.b16 %v1369
        %v1441 = vunpack.c.l.b16 %v1370
        %v1442 = vunpack.c.l.b16 %v1371
        %v1443 = vunpack.c.l.b16 %v1372
        %v1444 = vunpack.c.l.b16 %v1373
        %v1445 = vunpack.c.l.b16 %v1374
        %v1446 = vunpack.c.l.b16 %v1375
        %v1447 = vunpack.c.l.b16 %v1376
        %v1448 = vunpack.c.l.b16 %v1377
        %v1449 = vunpack.c.l.b16 %v1378
        %v1450 = vunpack.c.l.b16 %v1379
        %v1451 = vunpack.c.l.b16 %v1380
        %v1452 = vunpack.c.l.b16 %v1381
        %v1453 = vunpack.c.l.b16 %v1382
        %v1454 = vunpack.c.l.b16 %v1383
        %v1455 = vunpack.c.l.b16 %v1384
        %v1456 = vunpack.c.l.b16 %v1385
        %v1457 = vunpack.c.l.b16 %v1386
        %v1458 = vunpack.c.l.b16 %v1387
        %v1459 = vunpack.c.l.b16 %v1388
        %v1460 = vunpack.c.l.b16 %v1389
        %v1461 = vpack.c.b16 %v1430, %v1429
        %v1462 = vpack.c.b16 %v1432, %v1431
        %v1463 = vpack.c.b16 %v1434, %v1433
        %v1464 = vpack.c.b16 %v1436, %v1435
        %v1465 = vpack.c.b16 %v1438, %v1437
        %v1466 = vpack.c.b16 %v1440, %v1439
        %v1467 = vpack.c.b16 %v1442, %v1441
        %v1468 = vpack.c.b16 %v1444, %v1443
        %v1469 = vpack.c.b16 %v1446, %v1445
        %v1470 = vpack.c.b16 %v1448, %v1447
        %v1471 = vpack.c.b16 %v1450, %v1449
        %v1472 = vpack.c.b16 %v1452, %v1451
        %v1473 = vpack.c.b16 %v1454, %v1453
        %v1474 = vpack.c.b16 %v1456, %v1455
        %v1475 = vpack.c.b16 %v1458, %v1457
        %v1476 = vpack.c.b16 %v1460, %v1459
        %1493 = vmatprep.subr.bf16.mxu0 0
        %1494 = vmatpush1.bf16.msra.mxu0 %v1461
        %1495 = vmatprep.subr.bf16.mxu0 0
        %1496 = vmatpush1.bf16.msra.mxu0 %v1462
        %1497 = vmatprep.subr.bf16.mxu0 0
        %1498 = vmatpush1.bf16.msra.mxu0 %v1463
        %1499 = vmatprep.subr.bf16.mxu0 0
        %1500 = vmatpush1.bf16.msra.mxu0 %v1464
        %1501 = vmatprep.subr.bf16.mxu0 0
        %1502 = vmatpush1.bf16.msra.mxu0 %v1465
        %1503 = vmatprep.subr.bf16.mxu0 0
        %1504 = vmatpush1.bf16.msra.mxu0 %v1466
        %1505 = vmatprep.subr.bf16.mxu0 0
        %1506 = vmatpush1.bf16.msra.mxu0 %v1467
        %1507 = vmatprep.subr.bf16.mxu0 0
        %1508 = vmatpush1.bf16.msra.mxu0 %v1468
        %1509 = vmatprep.subr.bf16.mxu0 0
        %1510 = vmatpush1.bf16.msra.mxu0 %v1469
        %1511 = vmatprep.subr.bf16.mxu0 0
        %1512 = vmatpush1.bf16.msra.mxu0 %v1470
        %1513 = vmatprep.subr.bf16.mxu0 0
        %1514 = vmatpush1.bf16.msra.mxu0 %v1471
        %1515 = vmatprep.subr.bf16.mxu0 0
        %1516 = vmatpush1.bf16.msra.mxu0 %v1472
        %1517 = vmatprep.subr.bf16.mxu0 0
        %1518 = vmatpush1.bf16.msra.mxu0 %v1473
        %1519 = vmatprep.subr.bf16.mxu0 0
        %1520 = vmatpush1.bf16.msra.mxu0 %v1474
        %1521 = vmatprep.subr.bf16.mxu0 0
        %1522 = vmatpush1.bf16.msra.mxu0 %v1475
        %1523 = vmatprep.subr.bf16.mxu0 0
        %1524 = vmatpush1.bf16.msra.mxu0 %v1476
        %1525 = vmatprep.mubr.bf16.mxu0 %v1357
        %1526 = vmatmul.mubr.bf16.gmra.mrb[0].mxu0 %v1356
        %v1527 = vpop.f32.mrb[0].mxu0
        %v1528 = vadd.f32 %v1395, %v1527
        %v1529 = vpop.f32.mrb[0].mxu0
        %v1530 = vpop.f32.mrb[0].mxu0
        %v1531 = vadd.f32 %v1395, %v1530
        %v1532 = vpop.f32.mrb[0].mxu0
        %1533 = vdwg.mxu0
        %p1534 = scmp.ne.s32.totalorder %s47, 2
        // Predicated region
        $region121: #{tpu_custom_call.1} parent=91 // pred_check
          %p1535 = pneg %p1534
        $region122: #{tpu_custom_call.1} parent=91 // pred_check_branch
          %1537 = sbr.rel (%p1535) target = $region124
        $region123: #{tpu_custom_call.1} parent=91 // pred_region
          %v1538 = vmax.f32 %v1528, 0.0
          %v1539 = vmax.f32 %v1531, 0.0
          %1540 = vst [vmem:[#allocation2] sm:$0xff] %v1538
          %1541 = vst [vmem:[#allocation2 + $0x8] sm:$0xff] %v1539
          %v1543 = vsel %vm1087, %v1025, 0
          %1545 = vmatprep.subr.bf16.mxu0 0
          %1546 = vmatpush1.bf16.msra.mxu0 %v1081
          %1547 = vmatprep.subr.bf16.mxu0 0
          %1548 = vmatpush1.bf16.msra.mxu0 0
          %1549 = vmatprep.subr.bf16.mxu0 0
          %1550 = vmatpush1.bf16.msra.mxu0 0
          %1551 = vmatprep.subr.bf16.mxu0 0
          %1552 = vmatpush1.bf16.msra.mxu0 0
          %1553 = vmatprep.subr.bf16.mxu0 0
          %1554 = vmatpush1.bf16.msra.mxu0 0
          %1555 = vmatprep.subr.bf16.mxu0 0
          %1556 = vmatpush1.bf16.msra.mxu0 0
          %1557 = vmatprep.subr.bf16.mxu0 0
          %1558 = vmatpush1.bf16.msra.mxu0 0
          %1559 = vmatprep.subr.bf16.mxu0 0
          %1560 = vmatpush1.bf16.msra.mxu0 0
          %1561 = vmatprep.subr.bf16.mxu0 0
          %1562 = vmatpush1.bf16.msra.mxu0 0
          %1563 = vmatprep.subr.bf16.mxu0 0
          %1564 = vmatpush1.bf16.msra.mxu0 0
          %1565 = vmatprep.subr.bf16.mxu0 0
          %1566 = vmatpush1.bf16.msra.mxu0 0
          %1567 = vmatprep.subr.bf16.mxu0 0
          %1568 = vmatpush1.bf16.msra.mxu0 0
          %1569 = vmatprep.subr.bf16.mxu0 0
          %1570 = vmatpush1.bf16.msra.mxu0 0
          %1571 = vmatprep.subr.bf16.mxu0 0
          %1572 = vmatpush1.bf16.msra.mxu0 0
          %1573 = vmatprep.subr.bf16.mxu0 0
          %1574 = vmatpush1.bf16.msra.mxu0 0
          %1575 = vmatprep.subr.bf16.mxu0 0
          %1576 = vmatpush1.bf16.msra.mxu0 0
          %1577 = vmatprep.mubr.bf16.mxu0 0
          %1578 = vmatmul.mubr.bf16.gmra.mrb[0].mxu0 %v1543
          %v1579 = vpop.f32.mrb[0].mxu0
          %v1580 = vadd.f32 %v1028, %v1579
          %v1581 = vpop.f32.mrb[0].mxu0
          %v1582 = vpop.f32.mrb[0].mxu0
          %v1583 = vpop.f32.mrb[0].mxu0
          %1584 = vdwg.mxu0
          %v1585 = vpack.c.bf16 %v1580, %v1580
          %v1586 = vld [vmem:[%s784] sm:$0xff]
          %v1587 = vld [vmem:[%s784 + $0x8] sm:$0xff]
          %v1588 = vld [vmem:[%s784 + $0x10] sm:$0xff]
          %v1589 = vld [vmem:[%s784 + $0x18] sm:$0xff]
          %v1590 = vld [vmem:[%s784 + $0x20] sm:$0xff]
          %v1591 = vld [vmem:[%s784 + $0x28] sm:$0xff]
          %v1592 = vld [vmem:[%s784 + $0x30] sm:$0xff]
          %v1593 = vld [vmem:[%s784 + $0x38] sm:$0xff]
          %v1594 = vld [vmem:[%s784 + $0x40] sm:$0xff]
          %v1595 = vld [vmem:[%s784 + $0x48] sm:$0xff]
          %v1596 = vld [vmem:[%s784 + $0x50] sm:$0xff]
          %v1597 = vld [vmem:[%s784 + $0x58] sm:$0xff]
          %v1598 = vld [vmem:[%s784 + $0x60] sm:$0xff]
          %v1599 = vld [vmem:[%s784 + $0x68] sm:$0xff]
          %v1600 = vld [vmem:[%s784 + $0x70] sm:$0xff]
          %v1601 = vld [vmem:[%s784 + $0x78] sm:$0xff]
          %v1602 = vld [vmem:[%s941] sm:$0x3]
          %v1604 = vlaneseq
          %v1605 = vshrl.u32 %v1604, 7
          %v1606 = vsub.s32 0, %v1605
          %v1607 = vrot.slane %v1602, %v1606
          %v1608 = vlaneseq
          %v1609 = vshrl.u32 %v1608, 7
          %v1610 = vsub.s32 1, %v1609
          %v1611 = vrot.slane %v1602, %v1610
          %v1630 = vunpack.c.l.b16 %v1586
          %v1631 = vunpack.c.h.b16 %v1586
          %v1632 = vunpack.c.l.b16 %v1587
          %v1633 = vunpack.c.h.b16 %v1587
          %v1634 = vunpack.c.l.b16 %v1588
          %v1635 = vunpack.c.h.b16 %v1588
          %v1636 = vunpack.c.l.b16 %v1589
          %v1637 = vunpack.c.h.b16 %v1589
          %v1638 = vunpack.c.l.b16 %v1590
          %v1639 = vunpack.c.h.b16 %v1590
          %v1640 = vunpack.c.l.b16 %v1591
          %v1641 = vunpack.c.h.b16 %v1591
          %v1642 = vunpack.c.l.b16 %v1592
          %v1643 = vunpack.c.h.b16 %v1592
          %v1644 = vunpack.c.l.b16 %v1593
          %v1645 = vunpack.c.h.b16 %v1593
          %v1646 = vunpack.c.l.b16 %v1594
          %v1647 = vunpack.c.h.b16 %v1594
          %v1648 = vunpack.c.l.b16 %v1595
          %v1649 = vunpack.c.h.b16 %v1595
          %v1650 = vunpack.c.l.b16 %v1596
          %v1651 = vunpack.c.h.b16 %v1596
          %v1652 = vunpack.c.l.b16 %v1597
          %v1653 = vunpack.c.h.b16 %v1597
          %v1654 = vunpack.c.l.b16 %v1598
          %v1655 = vunpack.c.h.b16 %v1598
          %v1656 = vunpack.c.l.b16 %v1599
          %v1657 = vunpack.c.h.b16 %v1599
          %v1658 = vunpack.c.l.b16 %v1600
          %v1659 = vunpack.c.h.b16 %v1600
          %v1660 = vunpack.c.l.b16 %v1601
          %v1661 = vunpack.c.h.b16 %v1601
          %v1662 = vpack.c.b16 %v1632, %v1630
          %v1663 = vpack.c.b16 %v1633, %v1631
          %v1664 = vpack.c.b16 %v1636, %v1634
          %v1665 = vpack.c.b16 %v1637, %v1635
          %v1666 = vpack.c.b16 %v1640, %v1638
          %v1667 = vpack.c.b16 %v1641, %v1639
          %v1668 = vpack.c.b16 %v1644, %v1642
          %v1669 = vpack.c.b16 %v1645, %v1643
          %v1670 = vpack.c.b16 %v1648, %v1646
          %v1671 = vpack.c.b16 %v1649, %v1647
          %v1672 = vpack.c.b16 %v1652, %v1650
          %v1673 = vpack.c.b16 %v1653, %v1651
          %v1674 = vpack.c.b16 %v1656, %v1654
          %v1675 = vpack.c.b16 %v1657, %v1655
          %v1676 = vpack.c.b16 %v1660, %v1658
          %v1677 = vpack.c.b16 %v1661, %v1659
          %1694 = vmatprep.subr.bf16.mxu0 %v1663
          %1695 = vmatpush1.bf16.msra.mxu0 %v1662
          %1696 = vmatprep.subr.bf16.mxu0 %v1665
          %1697 = vmatpush1.bf16.msra.mxu0 %v1664
          %1698 = vmatprep.subr.bf16.mxu0 %v1667
          %1699 = vmatpush1.bf16.msra.mxu0 %v1666
          %1700 = vmatprep.subr.bf16.mxu0 %v1669
          %1701 = vmatpush1.bf16.msra.mxu0 %v1668
          %1702 = vmatprep.subr.bf16.mxu0 %v1671
          %1703 = vmatpush1.bf16.msra.mxu0 %v1670
          %1704 = vmatprep.subr.bf16.mxu0 %v1673
          %1705 = vmatpush1.bf16.msra.mxu0 %v1672
          %1706 = vmatprep.subr.bf16.mxu0 %v1675
          %1707 = vmatpush1.bf16.msra.mxu0 %v1674
          %1708 = vmatprep.subr.bf16.mxu0 %v1677
          %1709 = vmatpush1.bf16.msra.mxu0 %v1676
          %1710 = vmatprep.subr.bf16.mxu0 0
          %1711 = vmatpush1.bf16.msra.mxu0 0
          %1712 = vmatprep.subr.bf16.mxu0 0
          %1713 = vmatpush1.bf16.msra.mxu0 0
          %1714 = vmatprep.subr.bf16.mxu0 0
          %1715 = vmatpush1.bf16.msra.mxu0 0
          %1716 = vmatprep.subr.bf16.mxu0 0
          %1717 = vmatpush1.bf16.msra.mxu0 0
          %1718 = vmatprep.subr.bf16.mxu0 0
          %1719 = vmatpush1.bf16.msra.mxu0 0
          %1720 = vmatprep.subr.bf16.mxu0 0
          %1721 = vmatpush1.bf16.msra.mxu0 0
          %1722 = vmatprep.subr.bf16.mxu0 0
          %1723 = vmatpush1.bf16.msra.mxu0 0
          %1724 = vmatprep.subr.bf16.mxu0 0
          %1725 = vmatpush1.bf16.msra.mxu0 0
          %1726 = vmatprep.mubr.bf16.mxu0 0
          %1727 = vmatmul.mubr.bf16.gmra.mrb[0].mxu0 %v1585
          %v1728 = vpop.f32.mrb[0].mxu0
          %v1729 = vadd.f32 %v1607, %v1728
          %v1730 = vpop.f32.mrb[0].mxu0
          %v1731 = vadd.f32 %v1611, %v1730
          %v1732 = vpop.f32.mrb[0].mxu0
          %v1733 = vpop.f32.mrb[0].mxu0
          %1734 = vdwg.mxu0
          %v1735 = vmax.f32 %v1729, 0.0
          %v1736 = vmax.f32 %v1731, 0.0
          %v1737 = vpack.c.bf16 %v1735, %v1735
          %v1738 = vpack.c.bf16 %v1736, %v1736
          %v1739 = vld [vmem:[%s793] sm:$0xf]
          %v1740 = vld [vmem:[%s793 + $0x4] sm:$0xf]
          %v1741 = vld [vmem:[%s793 + $0x8] sm:$0xf]
          %v1742 = vld [vmem:[%s793 + $0xc] sm:$0xf]
          %v1743 = vld [vmem:[%s793 + $0x10] sm:$0xf]
          %v1744 = vld [vmem:[%s793 + $0x14] sm:$0xf]
          %v1745 = vld [vmem:[%s793 + $0x18] sm:$0xf]
          %v1746 = vld [vmem:[%s793 + $0x1c] sm:$0xf]
          %v1747 = vld [vmem:[%s793 + $0x20] sm:$0xf]
          %v1748 = vld [vmem:[%s793 + $0x24] sm:$0xf]
          %v1749 = vld [vmem:[%s793 + $0x28] sm:$0xf]
          %v1750 = vld [vmem:[%s793 + $0x2c] sm:$0xf]
          %v1751 = vld [vmem:[%s793 + $0x30] sm:$0xf]
          %v1752 = vld [vmem:[%s793 + $0x34] sm:$0xf]
          %v1753 = vld [vmem:[%s793 + $0x38] sm:$0xf]
          %v1754 = vld [vmem:[%s793 + $0x3c] sm:$0xf]
          %v1755 = vld [vmem:[%s793 + $0x40] sm:$0xf]
          %v1756 = vld [vmem:[%s793 + $0x44] sm:$0xf]
          %v1757 = vld [vmem:[%s793 + $0x48] sm:$0xf]
          %v1758 = vld [vmem:[%s793 + $0x4c] sm:$0xf]
          %v1759 = vld [vmem:[%s793 + $0x50] sm:$0xf]
          %v1760 = vld [vmem:[%s793 + $0x54] sm:$0xf]
          %v1761 = vld [vmem:[%s793 + $0x58] sm:$0xf]
          %v1762 = vld [vmem:[%s793 + $0x5c] sm:$0xf]
          %v1763 = vld [vmem:[%s793 + $0x60] sm:$0xf]
          %v1764 = vld [vmem:[%s793 + $0x64] sm:$0xf]
          %v1765 = vld [vmem:[%s793 + $0x68] sm:$0xf]
          %v1766 = vld [vmem:[%s793 + $0x6c] sm:$0xf]
          %v1767 = vld [vmem:[%s793 + $0x70] sm:$0xf]
          %v1768 = vld [vmem:[%s793 + $0x74] sm:$0xf]
          %v1769 = vld [vmem:[%s793 + $0x78] sm:$0xf]
          %v1770 = vld [vmem:[%s793 + $0x7c] sm:$0xf]
          %v1771 = vld [vmem:[%s944] sm:$0x1]
          %v1773 = vlaneseq
          %v1774 = vshrl.u32 %v1773, 7
          %v1775 = vsub.s32 0, %v1774
          %v1776 = vrot.slane %v1771, %v1775
          %v1810 = vunpack.c.l.b16 %v1739
          %v1811 = vunpack.c.l.b16 %v1740
          %v1812 = vunpack.c.l.b16 %v1741
          %v1813 = vunpack.c.l.b16 %v1742
          %v1814 = vunpack.c.l.b16 %v1743
          %v1815 = vunpack.c.l.b16 %v1744
          %v1816 = vunpack.c.l.b16 %v1745
          %v1817 = vunpack.c.l.b16 %v1746
          %v1818 = vunpack.c.l.b16 %v1747
          %v1819 = vunpack.c.l.b16 %v1748
          %v1820 = vunpack.c.l.b16 %v1749
          %v1821 = vunpack.c.l.b16 %v1750
          %v1822 = vunpack.c.l.b16 %v1751
          %v1823 = vunpack.c.l.b16 %v1752
          %v1824 = vunpack.c.l.b16 %v1753
          %v1825 = vunpack.c.l.b16 %v1754
          %v1826 = vunpack.c.l.b16 %v1755
          %v1827 = vunpack.c.l.b16 %v1756
          %v1828 = vunpack.c.l.b16 %v1757
          %v1829 = vunpack.c.l.b16 %v1758
          %v1830 = vunpack.c.l.b16 %v1759
          %v1831 = vunpack.c.l.b16 %v1760
          %v1832 = vunpack.c.l.b16 %v1761
          %v1833 = vunpack.c.l.b16 %v1762
          %v1834 = vunpack.c.l.b16 %v1763
          %v1835 = vunpack.c.l.b16 %v1764
          %v1836 = vunpack.c.l.b16 %v1765
          %v1837 = vunpack.c.l.b16 %v1766
          %v1838 = vunpack.c.l.b16 %v1767
          %v1839 = vunpack.c.l.b16 %v1768
          %v1840 = vunpack.c.l.b16 %v1769
          %v1841 = vunpack.c.l.b16 %v1770
          %v1842 = vpack.c.b16 %v1811, %v1810
          %v1843 = vpack.c.b16 %v1813, %v1812
          %v1844 = vpack.c.b16 %v1815, %v1814
          %v1845 = vpack.c.b16 %v1817, %v1816
          %v1846 = vpack.c.b16 %v1819, %v1818
          %v1847 = vpack.c.b16 %v1821, %v1820
          %v1848 = vpack.c.b16 %v1823, %v1822
          %v1849 = vpack.c.b16 %v1825, %v1824
          %v1850 = vpack.c.b16 %v1827, %v1826
          %v1851 = vpack.c.b16 %v1829, %v1828
          %v1852 = vpack.c.b16 %v1831, %v1830
          %v1853 = vpack.c.b16 %v1833, %v1832
          %v1854 = vpack.c.b16 %v1835, %v1834
          %v1855 = vpack.c.b16 %v1837, %v1836
          %v1856 = vpack.c.b16 %v1839, %v1838
          %v1857 = vpack.c.b16 %v1841, %v1840
          %1874 = vmatprep.subr.bf16.mxu0 0
          %1875 = vmatpush1.bf16.msra.mxu0 %v1842
          %1876 = vmatprep.subr.bf16.mxu0 0
          %1877 = vmatpush1.bf16.msra.mxu0 %v1843
          %1878 = vmatprep.subr.bf16.mxu0 0
          %1879 = vmatpush1.bf16.msra.mxu0 %v1844
          %1880 = vmatprep.subr.bf16.mxu0 0
          %1881 = vmatpush1.bf16.msra.mxu0 %v1845
          %1882 = vmatprep.subr.bf16.mxu0 0
          %1883 = vmatpush1.bf16.msra.mxu0 %v1846
          %1884 = vmatprep.subr.bf16.mxu0 0
          %1885 = vmatpush1.bf16.msra.mxu0 %v1847
          %1886 = vmatprep.subr.bf16.mxu0 0
          %1887 = vmatpush1.bf16.msra.mxu0 %v1848
          %1888 = vmatprep.subr.bf16.mxu0 0
          %1889 = vmatpush1.bf16.msra.mxu0 %v1849
          %1890 = vmatprep.subr.bf16.mxu0 0
          %1891 = vmatpush1.bf16.msra.mxu0 %v1850
          %1892 = vmatprep.subr.bf16.mxu0 0
          %1893 = vmatpush1.bf16.msra.mxu0 %v1851
          %1894 = vmatprep.subr.bf16.mxu0 0
          %1895 = vmatpush1.bf16.msra.mxu0 %v1852
          %1896 = vmatprep.subr.bf16.mxu0 0
          %1897 = vmatpush1.bf16.msra.mxu0 %v1853
          %1898 = vmatprep.subr.bf16.mxu0 0
          %1899 = vmatpush1.bf16.msra.mxu0 %v1854
          %1900 = vmatprep.subr.bf16.mxu0 0
          %1901 = vmatpush1.bf16.msra.mxu0 %v1855
          %1902 = vmatprep.subr.bf16.mxu0 0
          %1903 = vmatpush1.bf16.msra.mxu0 %v1856
          %1904 = vmatprep.subr.bf16.mxu0 0
          %1905 = vmatpush1.bf16.msra.mxu0 %v1857
          %1906 = vmatprep.mubr.bf16.mxu0 %v1738
          %1907 = vmatmul.mubr.bf16.gmra.mrb[0].mxu0 %v1737
          %v1908 = vpop.f32.mrb[0].mxu0
          %v1909 = vadd.f32 %v1776, %v1908
          %v1910 = vpop.f32.mrb[0].mxu0
          %v1911 = vpop.f32.mrb[0].mxu0
          %v1912 = vpop.f32.mrb[0].mxu0
          %1913 = vdwg.mxu0
          %v1914 = vmax.f32 %v1909, 0.0
          %1915 = vst [vmem:[#allocation3] sm:$0x3] %v1914
        $region124: #{tpu_custom_call.1} parent=91 // pred_fallthru
          _
        %p1916 = scmp.eq.s32.totalorder %s47, 2
        // Predicated region
        $region125: #{tpu_custom_call.1} parent=91 // pred_check
          %p1917 = pneg %p1916
        $region126: #{tpu_custom_call.1} parent=91 // pred_check_branch
          %1919 = sbr.rel (%p1917) target = $region128
        $region127: #{tpu_custom_call.1} parent=91 // pred_region
          %v1920 = vpack.c.bf16 %v1531, %v1528
          %v1922 = vsel %vm1087, %v1025, 0
          %1924 = vmatprep.subr.bf16.mxu0 0
          %1925 = vmatpush1.bf16.msra.mxu0 %v1920
          %1926 = vmatprep.subr.bf16.mxu0 0
          %1927 = vmatpush1.bf16.msra.mxu0 0
          %1928 = vmatprep.subr.bf16.mxu0 0
          %1929 = vmatpush1.bf16.msra.mxu0 0
          %1930 = vmatprep.subr.bf16.mxu0 0
          %1931 = vmatpush1.bf16.msra.mxu0 0
          %1932 = vmatprep.subr.bf16.mxu0 0
          %1933 = vmatpush1.bf16.msra.mxu0 0
          %1934 = vmatprep.subr.bf16.mxu0 0
          %1935 = vmatpush1.bf16.msra.mxu0 0
          %1936 = vmatprep.subr.bf16.mxu0 0
          %1937 = vmatpush1.bf16.msra.mxu0 0
          %1938 = vmatprep.subr.bf16.mxu0 0
          %1939 = vmatpush1.bf16.msra.mxu0 0
          %1940 = vmatprep.subr.bf16.mxu0 0
          %1941 = vmatpush1.bf16.msra.mxu0 0
          %1942 = vmatprep.subr.bf16.mxu0 0
          %1943 = vmatpush1.bf16.msra.mxu0 0
          %1944 = vmatprep.subr.bf16.mxu0 0
          %1945 = vmatpush1.bf16.msra.mxu0 0
          %1946 = vmatprep.subr.bf16.mxu0 0
          %1947 = vmatpush1.bf16.msra.mxu0 0
          %1948 = vmatprep.subr.bf16.mxu0 0
          %1949 = vmatpush1.bf16.msra.mxu0 0
          %1950 = vmatprep.subr.bf16.mxu0 0
          %1951 = vmatpush1.bf16.msra.mxu0 0
          %1952 = vmatprep.subr.bf16.mxu0 0
          %1953 = vmatpush1.bf16.msra.mxu0 0
          %1954 = vmatprep.subr.bf16.mxu0 0
          %1955 = vmatpush1.bf16.msra.mxu0 0
          %1956 = vmatprep.mubr.bf16.mxu0 0
          %1957 = vmatmul.mubr.bf16.gmra.mrb[0].mxu0 %v1922
          %v1958 = vpop.f32.mrb[0].mxu0
          %v1959 = vadd.f32 0.0, %v1958
          %v1960 = vpop.f32.mrb[0].mxu0
          %v1961 = vpop.f32.mrb[0].mxu0
          %v1962 = vpop.f32.mrb[0].mxu0
          %1963 = vdwg.mxu0
          %v1964 = vld [vmem:[%s930] sm:$0x3]
          %1966 = vset.pattern.permute.xlu0 0
          %1967 = vperm.xlu0 %1966, %v1964
          %v1968 = vpop.permute.xlu0 %1967
          %v1970 = vmul.f32 %v1959, %v1968
          %v1971 = vpack.c.bf16 %v1970, %v1970
          %v1972 = vld [vmem:[%s16] sm:$0xf]
          %v1973 = vld [vmem:[%s16 + $0x4] sm:$0xf]
          %v1974 = vld [vmem:[%s16 + $0x8] sm:$0xf]
          %v1975 = vld [vmem:[%s16 + $0xc] sm:$0xf]
          %v1976 = vld [vmem:[%s16 + $0x10] sm:$0xf]
          %v1977 = vld [vmem:[%s16 + $0x14] sm:$0xf]
          %v1978 = vld [vmem:[%s16 + $0x18] sm:$0xf]
          %v1979 = vld [vmem:[%s16 + $0x1c] sm:$0xf]
          %v1980 = vld [vmem:[%s16 + $0x20] sm:$0xf]
          %v1981 = vld [vmem:[%s16 + $0x24] sm:$0xf]
          %v1982 = vld [vmem:[%s16 + $0x28] sm:$0xf]
          %v1983 = vld [vmem:[%s16 + $0x2c] sm:$0xf]
          %v1984 = vld [vmem:[%s16 + $0x30] sm:$0xf]
          %v1985 = vld [vmem:[%s16 + $0x34] sm:$0xf]
          %v1986 = vld [vmem:[%s16 + $0x38] sm:$0xf]
          %v1987 = vld [vmem:[%s16 + $0x3c] sm:$0xf]
          %v1988 = vld [vmem:[%s17] sm:$0x1]
          %v1990 = vlaneseq
          %v1991 = vshrl.u32 %v1990, 7
          %v1992 = vsub.s32 0, %v1991
          %v1993 = vrot.slane %v1988, %v1992
          %v2011 = vunpack.c.l.b16 %v1972
          %v2012 = vunpack.c.l.b16 %v1973
          %v2013 = vunpack.c.l.b16 %v1974
          %v2014 = vunpack.c.l.b16 %v1975
          %v2015 = vunpack.c.l.b16 %v1976
          %v2016 = vunpack.c.l.b16 %v1977
          %v2017 = vunpack.c.l.b16 %v1978
          %v2018 = vunpack.c.l.b16 %v1979
          %v2019 = vunpack.c.l.b16 %v1980
          %v2020 = vunpack.c.l.b16 %v1981
          %v2021 = vunpack.c.l.b16 %v1982
          %v2022 = vunpack.c.l.b16 %v1983
          %v2023 = vunpack.c.l.b16 %v1984
          %v2024 = vunpack.c.l.b16 %v1985
          %v2025 = vunpack.c.l.b16 %v1986
          %v2026 = vunpack.c.l.b16 %v1987
          %v2027 = vpack.c.b16 %v2012, %v2011
          %v2028 = vpack.c.b16 %v2014, %v2013
          %v2029 = vpack.c.b16 %v2016, %v2015
          %v2030 = vpack.c.b16 %v2018, %v2017
          %v2031 = vpack.c.b16 %v2020, %v2019
          %v2032 = vpack.c.b16 %v2022, %v2021
          %v2033 = vpack.c.b16 %v2024, %v2023
          %v2034 = vpack.c.b16 %v2026, %v2025
          %2043 = vmatprep.subr.bf16.mxu0 0
          %2044 = vmatpush1.bf16.msra.mxu0 %v2027
          %2045 = vmatprep.subr.bf16.mxu0 0
          %2046 = vmatpush1.bf16.msra.mxu0 %v2028
          %2047 = vmatprep.subr.bf16.mxu0 0
          %2048 = vmatpush1.bf16.msra.mxu0 %v2029
          %2049 = vmatprep.subr.bf16.mxu0 0
          %2050 = vmatpush1.bf16.msra.mxu0 %v2030
          %2051 = vmatprep.subr.bf16.mxu0 0
          %2052 = vmatpush1.bf16.msra.mxu0 %v2031
          %2053 = vmatprep.subr.bf16.mxu0 0
          %2054 = vmatpush1.bf16.msra.mxu0 %v2032
          %2055 = vmatprep.subr.bf16.mxu0 0
          %2056 = vmatpush1.bf16.msra.mxu0 %v2033
          %2057 = vmatprep.subr.bf16.mxu0 0
          %2058 = vmatpush1.bf16.msra.mxu0 %v2034
          %2059 = vmatprep.subr.bf16.mxu0 0
          %2060 = vmatpush1.bf16.msra.mxu0 0
          %2061 = vmatprep.subr.bf16.mxu0 0
          %2062 = vmatpush1.bf16.msra.mxu0 0
          %2063 = vmatprep.subr.bf16.mxu0 0
          %2064 = vmatpush1.bf16.msra.mxu0 0
          %2065 = vmatprep.subr.bf16.mxu0 0
          %2066 = vmatpush1.bf16.msra.mxu0 0
          %2067 = vmatprep.subr.bf16.mxu0 0
          %2068 = vmatpush1.bf16.msra.mxu0 0
          %2069 = vmatprep.subr.bf16.mxu0 0
          %2070 = vmatpush1.bf16.msra.mxu0 0
          %2071 = vmatprep.subr.bf16.mxu0 0
          %2072 = vmatpush1.bf16.msra.mxu0 0
          %2073 = vmatprep.subr.bf16.mxu0 0
          %2074 = vmatpush1.bf16.msra.mxu0 0
          %2075 = vmatprep.mubr.bf16.mxu0 0
          %2076 = vmatmul.mubr.bf16.gmra.mrb[0].mxu0 %v1971
          %v2077 = vpop.f32.mrb[0].mxu0
          %v2078 = vadd.f32 %v1993, %v2077
          %v2079 = vpop.f32.mrb[0].mxu0
          %v2080 = vpop.f32.mrb[0].mxu0
          %v2081 = vpop.f32.mrb[0].mxu0
          %2082 = vdwg.mxu0
          %2083 = vst [vmem:[%s905] sm:$0x3] %v2078
        $region128: #{tpu_custom_call.1} parent=91 // pred_fallthru
          _
        %s2084 = sand.u32 %s517, 1
        %s2085 = scalar_lea.sflag [#allocation6], %s2084
        %s2086 = sand.u32 %s517, 1
        %s2087 = smul.addr %s2086, 2
        %s2088 = scalar_lea.vmem [#allocation15], %s2087
        // Predicated region
        $region129: #{tpu_custom_call.1} parent=91 // pred_check
          %p2089 = pneg %p527
        $region130: #{tpu_custom_call.1} parent=91 // pred_check_branch
          %2091 = sbr.rel (%p2089) target = $region132
        $region131: #{tpu_custom_call.1} parent=91 // pred_region
          %s2093 = ssub.s32 32, 32
          %2094 = vsyncadd %s2085, %s2093
          %s2095 = smul.addr %s46, 32
          %s2096 = scalar_lea.hbm %s18, %s2095
          %s2098 = sshll.u32 %s2088, 4
          %s2099 = int_to_ptr.vmem [resolvable:$true] %s2098
          %2101 = dma.vmem_to_hbm [thread:$0]  %s2099, 32, %s2096, %s2085
        $region132: #{tpu_custom_call.1} parent=91 // pred_fallthru
          _
      $region92: #{tpu_custom_call.1} parent=5 // pred_fallthru
        _
      %p2102 = scmp.le.s32.totalorder 2, %s37
      // Predicated region
      $region133: #{tpu_custom_call.1} parent=5 // pred_check
        %p2103 = pneg %p2102
      $region134: #{tpu_custom_call.1} parent=5 // pred_check_branch
        %2105 = sbr.rel (%p2103) target = $region136
      $region135: #{tpu_custom_call.1} parent=5 // pred_region
        %s2106 = ssub.s32 %s37, 2
        // Predicated region
        $region137: #{tpu_custom_call.1} parent=135 // pred_check
          %p2107 = pneg %p533
        $region138: #{tpu_custom_call.1} parent=135 // pred_check_branch
          %2109 = sbr.rel (%p2107) target = $region140
        $region139: #{tpu_custom_call.1} parent=135 // pred_region
          %s2110 = sand.u32 %s518, 1
          %s2111 = scalar_lea.sflag [#allocation6], %s2110
          %s2112 = sand.u32 %s518, 1
          %s2113 = smul.addr %s2112, 2
          %s2114 = scalar_lea.vmem [#allocation15], %s2113
          %2115 = dma.done %s2111, 32
        $region140: #{tpu_custom_call.1} parent=135 // pred_fallthru
          _
      $region136: #{tpu_custom_call.1} parent=5 // pred_fallthru
        _
    $region6: #{tpu_custom_call.1} parent=1 // loop_footer
      %s41 = sadd.s32 1, %s37
    $region7: #{tpu_custom_call.1} parent=1 // loop_footer_branch
      %36 = sbr.rel target = $region3
    $region8: #{tpu_custom_call.1} parent=1 // loop_exit
      _
    %2116 = vsyncpa [#allocation5], 1
    %s2117 = scalar_lea.sflag [#allocation5], 1
    %2118 = vsyncpa %s2117, 1
    %2119 = vsyncpa [#allocation10], 1
    %s2120 = scalar_lea.sflag [#allocation10], 1
    %2121 = vsyncpa %s2120, 1
    %2122 = vsyncpa [#allocation13], 1
    %s2123 = scalar_lea.sflag [#allocation13], 1
    %2124 = vsyncpa %s2123, 1
    %2125 = vsyncpa [#allocation6], 1
    %s2126 = scalar_lea.sflag [#allocation6], 1
    %2127 = vsyncpa %s2126, 1
    %2128 = vsyncpa [#allocation7], 1
    %s2129 = scalar_lea.sflag [#allocation7], 1
    %2130 = vsyncpa %s2129, 1

</llo_original>
